<compile_context>
chip_gen: v6e
topology: v6e:2x2x1
jax: 0.10.0
libtpu: 0.0.40
codegen_flags: <defaults>
</compile_context>

<pallas_src>
import numpy as np
import jax
import jax.numpy as jnp
from jax import lax
from jax.experimental import pallas as pl
from jax.experimental.pallas import tpu as pltpu

_EPS = 1e-5
_LANES = 128


# ---------------------------------------------------------------------------
# Static geometry shared by pack_params() and dqn_forward()
# ---------------------------------------------------------------------------
def _dims(B, Cin, H, W):
    C1, C2, K1, S1, K2, S2 = 16, 32, 8, 4, 4, 2
    OH1, OW1 = (H - K1) // S1 + 1, (W - K1) // S1 + 1
    OH2, OW2 = (OH1 - K2) // S2 + 1, (OW1 - K2) // S2 + 1
    n_pos, n_taps = OH2 * OW2, K2 * K2
    m1 = B * OH1 * OW1            # conv1 output rows (= BN1 sample count)
    R2 = n_pos * B                # conv2 output rows, ordered (pos, b)
    F1 = Cin * K1 * K1            # conv1 im2col feature width
    n_feat = n_pos * C2 + 2       # fc input width (conv features + mass + zoom)
    offs = {"w1": 0,
            "sel": F1,
            "w2": F1 + n_taps * R2,
            "fc": F1 + n_taps * R2 + n_taps * C1}
    rows = offs["fc"] + n_feat
    return dict(C1=C1, C2=C2, K1=K1, S1=S1, K2=K2, S2=S2,
                OH1=OH1, OW1=OW1, OH2=OH2, OW2=OW2,
                n_pos=n_pos, n_taps=n_taps, m1=m1, R2=R2, F1=F1,
                n_feat=n_feat, offs=offs, rows=rows)


# ---------------------------------------------------------------------------
# Fused Pallas kernel (whole forward, single grid step, all data in VMEM)
# ---------------------------------------------------------------------------
def _make_dqn_kernel(d, B, NO):
    C1, C2 = d["C1"], d["C2"]
    n_pos, n_taps = d["n_pos"], d["n_taps"]
    m1, R2, F1, n_feat = d["m1"], d["R2"], d["F1"], d["n_feat"]
    o = d["offs"]
    inv_m1, inv_m2 = 1.0 / m1, 1.0 / R2

    def kernel(p1_ref, mz_ref, blob_ref, vec_ref, o_ref, gat_ref, feat_ref):
        # ---- conv1 as ONE im2col matmul (bias-free: a conv bias cancels
        #      exactly in training-mode BN's mean subtraction).
        y1 = jnp.dot(p1_ref[...], blob_ref[o["w1"]:o["w1"] + F1, 0:C1],
                     preferred_element_type=jnp.float32)               # (m1, C1) f32

        # ---- BN1 (training batch stats, one-pass variance, f32 math) + ReLU
        s1 = jnp.sum(y1, axis=0, keepdims=True)
        q1 = jnp.sum(y1 * y1, axis=0, keepdims=True)
        mean1 = s1 * inv_m1
        var1 = q1 * inv_m1 - mean1 * mean1
        scale1 = vec_ref[0:1, 0:C1] * lax.rsqrt(var1 + _EPS)
        shift1 = vec_ref[1:2, 0:C1] - mean1 * scale1
        y1 = jnp.maximum(y1 * scale1 + shift1, 0.0).astype(jnp.bfloat16)

        # ---- conv2 im2col: ONE 0/1-selection matmul gathers every needed
        #      row of y1 (rows ordered (tap, pos, b)) ...
        gathered = jnp.dot(blob_ref[o["sel"]:o["sel"] + n_taps * R2, 0:m1], y1,
                           preferred_element_type=jnp.float32)         # (n_taps*R2, C1)
        # ... then 16 independent lane-slice stores assemble the lane-major
        #     (R2, n_taps*C1) patch slab (no serial MXU / add chain).
        for g in range(n_taps):
            gat_ref[:, g * C1:(g + 1) * C1] = (
                gathered[g * R2:(g + 1) * R2, :].astype(jnp.bfloat16))

        # ---- conv2 as ONE matmul over the assembled patches
        acc = jnp.dot(gat_ref[...], blob_ref[o["w2"]:o["w2"] + n_taps * C1, 0:C2],
                      preferred_element_type=jnp.float32)              # (R2, C2) f32

        # ---- BN2 (training batch stats) + ReLU
        s2 = jnp.sum(acc, axis=0, keepdims=True)
        q2 = jnp.sum(acc * acc, axis=0, keepdims=True)
        mean2 = s2 * inv_m2
        var2 = q2 * inv_m2 - mean2 * mean2
        scale2 = vec_ref[2:3, 0:C2] * lax.rsqrt(var2 + _EPS)
        shift2 = vec_ref[3:4, 0:C2] - mean2 * scale2
        y2 = jnp.maximum(acc * scale2 + shift2, 0.0)                   # (R2, C2), rows (pos, b)

        # ---- flatten(NCHW) + concat[masses, zooms]: assemble ONE lane-dense
        #      (B, n_pos*C2 + 2) feature slab (fc weight rows were pre-permuted
        #      to (pos, co) order at pack time, so no transpose is needed).
        for pos in range(n_pos):
            feat_ref[:, pos * C2:(pos + 1) * C2] = (
                y2[pos * B:(pos + 1) * B, :].astype(jnp.bfloat16))
        feat_ref[:, n_pos * C2:n_feat] = mz_ref[...].astype(jnp.bfloat16)

        # ---- fc head: ONE matmul + bias
        o_ref[...] = (jnp.dot(feat_ref[...],
                              blob_ref[o["fc"]:o["fc"] + n_feat, 0:NO],
                              preferred_element_type=jnp.float32)
                      + vec_ref[4:5, 0:NO])

    return kernel


def _full_block(shape):
    # Whole-array block (exempt from the (8,128) divisibility requirement).
    return pl.BlockSpec(shape, lambda *_: (0,) * len(shape))


def _build_conv2_selector(B, OH1, OW1, K2, S2, OH2, OW2):
    """0/1 matrix gathering, per conv2 tap (kh,kw), the conv1 activation row
    needed at every conv2 output position.  Destination rows ordered
    (tap, pos, b); source column = b*OH1*OW1 + (S2*i+kh)*OW1 + (S2*j+kw)."""
    R2 = OH2 * OW2 * B
    sel = np.zeros((K2 * K2 * R2, B * OH1 * OW1), np.float32)
    for kh in range(K2):
        for kw in range(K2):
            g = kh * K2 + kw
            for i in range(OH2):
                for j in range(OW2):
                    for b in range(B):
                        dst = g * R2 + (i * OW2 + j) * B + b
                        src = b * OH1 * OW1 + (S2 * i + kh) * OW1 + (S2 * j + kw)
                        sel[dst, src] = 1.0
    return sel


# ---------------------------------------------------------------------------
# Parameter handling
# ---------------------------------------------------------------------------
def init_params(key, input_channels, num_outputs, linear_input_size):
    ks = jax.random.split(key, 4)
    # conv biases intentionally omitted -- a bias added right before
    # training-mode BatchNorm cancels exactly in the mean subtraction.
    return {
        "w1": jax.random.normal(ks[0], (16, input_channels, 8, 8), jnp.float32) * 0.05,
        "g1": jnp.ones((16,), jnp.float32),
        "bt1": jnp.zeros((16,), jnp.float32),
        "w2": jax.random.normal(ks[1], (32, 16, 4, 4), jnp.float32) * 0.05,
        "g2": jnp.ones((32,), jnp.float32),
        "bt2": jnp.zeros((32,), jnp.float32),
        "wfc": jax.random.normal(ks[2], (num_outputs, linear_input_size), jnp.float32) * 0.05,
        "bfc": jax.random.normal(ks[3], (num_outputs,), jnp.float32) * 0.01,
    }


def pack_params(params, batch_size, height, width):
    """One-time re-layout of PyTorch-style weights into the TWO static
    operands the fused kernel DMAs: a bf16 weight blob and an f32 (8,128)
    vector tile (zero runtime cost)."""
    w1 = np.asarray(params["w1"]); w2 = np.asarray(params["w2"])
    wfc = np.asarray(params["wfc"]); bfc = np.asarray(params["bfc"])
    C1o, Cin = w1.shape[0], w1.shape[1]
    C2o, NO = w2.shape[0], wfc.shape[0]
    d = _dims(batch_size, Cin, height, width)
    n_pos = d["n_pos"]
    n_conv = n_pos * C2o
    assert wfc.shape[1] == n_conv + 2

    # conv1 matmul weight: rows ordered (ci, kh, kw) = patches feature order.
    w1m = w1.reshape(C1o, -1).T                                        # (F1, 16)
    # conv2 row-gather selector (exactly 0/1 -> lossless in bf16).
    # TODO(synk): the selector is O(B^2); rebuild it batch-blocked (and split
    # the grid across v7x cores) before scaling B beyond ~8.
    selm = _build_conv2_selector(batch_size, d["OH1"], d["OW1"],
                                 d["K2"], d["S2"], d["OH2"], d["OW2"])  # (n_taps*R2, m1)
    # conv2 matmul weight: rows ordered (kh, kw, ci) = assembled patch columns.
    w2m = np.transpose(w2, (2, 3, 1, 0)).reshape(-1, C2o)              # (n_taps*16, 32)
    # fc weight rows re-ordered from PyTorch NCHW flatten (co*n_pos + pos) to
    # (pos*C2 + co), followed by the mass and zoom rows.
    wfc_conv = np.transpose(wfc[:, :n_conv].reshape(NO, C2o, n_pos),
                            (2, 1, 0)).reshape(n_conv, NO)
    wfc_full = np.concatenate([wfc_conv, wfc[:, n_conv:].T], axis=0)   # (n_feat, NO)

    def pad_lanes(x):
        assert x.shape[1] <= _LANES
        return np.pad(x, ((0, 0), (0, _LANES - x.shape[1])))

    blob = np.concatenate([pad_lanes(w1m), pad_lanes(selm),
                           pad_lanes(w2m), pad_lanes(wfc_full)], axis=0)
    assert blob.shape[0] == d["rows"]

    vec = np.zeros((8, _LANES), np.float32)
    vec[0, :C1o] = np.asarray(params["g1"])
    vec[1, :C1o] = np.asarray(params["bt1"])
    vec[2, :C2o] = np.asarray(params["g2"])
    vec[3, :C2o] = np.asarray(params["bt2"])
    vec[4, :NO] = bfc

    return {"blob": jnp.asarray(blob, jnp.bfloat16),
            "vec": jnp.asarray(vec, jnp.float32)}


# ---------------------------------------------------------------------------
# Forward pass (one patch-extraction XLA op + ONE pallas_call, 4 input DMAs)
# ---------------------------------------------------------------------------
def dqn_forward(kparams, grids, masses, zooms, num_outputs):
    B, Cin, H, W = grids.shape
    d = _dims(B, Cin, H, W)
    NO = num_outputs

    # conv1 im2col in ONE XLA op; feature order is channel-major (ci, kh, kw),
    # identical to PyTorch weight.reshape(C_out, -1) column order.  No row
    # padding: full-array blocks are exempt from the (8,128) rule.
    patches = lax.conv_general_dilated_patches(
        grids.astype(jnp.float32),
        filter_shape=(d["K1"], d["K1"]), window_strides=(d["S1"], d["S1"]),
        padding="VALID", dimension_numbers=("NCHW", "OIHW", "NHWC"),
        precision=lax.Precision.HIGHEST)
    p1 = patches.reshape(d["m1"], d["F1"]).astype(jnp.bfloat16)        # rows (b, oh, ow)
    mz = jnp.stack([masses, zooms], axis=1).astype(jnp.float32)        # (B, 2)

    operands = (p1, mz, kparams["blob"], kparams["vec"])
    kernel = _make_dqn_kernel(d, B, NO)

    flops = 2 * (d["m1"] * d["F1"] * d["C1"]
                 + d["n_taps"] * d["R2"] * d["m1"] * d["C1"]
                 + d["R2"] * d["n_taps"] * d["C1"] * d["C2"]
                 + B * d["n_feat"] * NO)
    bytes_accessed = sum(x.size * x.dtype.itemsize for x in operands) + B * NO * 4

    return pl.pallas_call(
        kernel,
        grid=(1,),
        in_specs=[_full_block(x.shape) for x in operands],
        out_specs=_full_block((B, NO)),
        out_shape=jax.ShapeDtypeStruct((B, NO), jnp.float32),
        scratch_shapes=[
            pltpu.VMEM((d["R2"], d["n_taps"] * d["C1"]), jnp.bfloat16),   # conv2 patch slab
            pltpu.VMEM((B, d["n_feat"]), jnp.bfloat16),                   # fc feature slab
        ],
        compiler_params=pltpu.CompilerParams(dimension_semantics=("arbitrary",)),
        cost_estimate=pl.CostEstimate(flops=flops,
                                      transcendentals=d["C1"] + d["C2"],
                                      bytes_accessed=bytes_accessed),
    )(*operands)


# ---------------------------------------------------------------------------
# Pure-JAX reference of the PyTorch forward (training-mode BN) for checking
# ---------------------------------------------------------------------------
def _bn_relu_train_nchw(y, gamma, beta):
    mean = jnp.mean(y, axis=(0, 2, 3), keepdims=True)
    var = jnp.mean((y - mean) ** 2, axis=(0, 2, 3), keepdims=True)
    yhat = (y - mean) * lax.rsqrt(var + _EPS)
    return jnp.maximum(yhat * gamma.reshape(1, -1, 1, 1) + beta.reshape(1, -1, 1, 1), 0.0)


def reference_forward(params, grids, masses, zooms):
    dn = ("NCHW", "OIHW", "NCHW")
    x = grids.astype(jnp.float32)
    y = lax.conv_general_dilated(x, params["w1"], (4, 4), "VALID",
                                 dimension_numbers=dn, precision=lax.Precision.HIGHEST)
    y = _bn_relu_train_nchw(y, params["g1"], params["bt1"])
    y = lax.conv_general_dilated(y, params["w2"], (2, 2), "VALID",
                                 dimension_numbers=dn, precision=lax.Precision.HIGHEST)
    y = _bn_relu_train_nchw(y, params["g2"], params["bt2"])
    flat = y.reshape(y.shape[0], -1)                                    # NCHW flatten
    feat = jnp.concatenate([flat, masses.astype(jnp.float32)[:, None],
                            zooms.astype(jnp.float32)[:, None]], axis=1)
    return jnp.dot(feat, params["wfc"].T,
                   precision=lax.Precision.HIGHEST) + params["bfc"][None, :]


# ---------------------------------------------------------------------------
if __name__ == "__main__":
    # H=W=32 -> conv1: 7x7, conv2: 2x2 -> linear_input = 2*2*32 + 2 = 130
    B, Cin, H, W = 2, 4, 32, 32
    NUM_OUTPUTS = 6

    def conv_out(s, k, st):
        return (s - (k - 1) - 1) // st + 1

    convw = conv_out(conv_out(W, 8, 4), 4, 2)
    convh = conv_out(conv_out(H, 8, 4), 4, 2)
    linear_input_size = convw * convh * 32 + 2

    key = jax.random.PRNGKey(0)
    k_x, k_m, k_z, k_p = jax.random.split(key, 4)
    grids = jax.random.normal(k_x, (B, Cin, H, W), jnp.float32)
    masses = jax.random.uniform(k_m, (B,), jnp.float32)
    zooms = jax.random.uniform(k_z, (B,), jnp.float32)

    params = init_params(k_p, Cin, NUM_OUTPUTS, linear_input_size)
    kparams = pack_params(params, B, H, W)

    fwd = jax.jit(dqn_forward, static_argnums=(4,))
    preds = fwd(kparams, grids, masses, zooms, NUM_OUTPUTS)
    jax.block_until_ready(preds)
    assert preds.shape == (B, NUM_OUTPUTS)

    # Cross-check the fused Pallas kernel against the pure-JAX f32 reference.
    # Tolerance accommodates bf16 MXU operands; BN math itself stays f32.
    ref = reference_forward(params, grids, masses, zooms)
    np.testing.assert_allclose(np.asarray(preds), np.asarray(ref),
                               rtol=3e-2, atol=3e-2)

    print("KERNEL_OK")
</pallas_src>

<mosaic_0001>
module attributes {stable_mosaic.version = 11 : i64} {
  func.func @kernel(%arg0: i32, %arg1: memref<98x256xbf16, #tpu.memory_space<vmem>>, %arg2: memref<2x2xf32, #tpu.memory_space<vmem>>, %arg3: memref<770x128xbf16, #tpu.memory_space<vmem>>, %arg4: memref<8x128xf32, #tpu.memory_space<vmem>>, %arg5: memref<2x6xf32, #tpu.memory_space<vmem>>, %arg6: memref<8x256xbf16, #tpu.memory_space<vmem>>, %arg7: memref<2x130xbf16, #tpu.memory_space<vmem>>) attributes {dimension_semantics = [#tpu.dimension_semantics<arbitrary>], iteration_bounds = array<i64: 1>, scalar_prefetch = 0 : i64, scratch_operands = 2 : i64, tpu.core_type = #tpu.core_type<tc>, window_params = [{pipeline_mode = #tpu.pipeline_mode<synchronous>, transform_indices = @transform_0, window_bounds = array<i64: 98, 256>}, {pipeline_mode = #tpu.pipeline_mode<synchronous>, transform_indices = @transform_1, window_bounds = array<i64: 2, 2>}, {pipeline_mode = #tpu.pipeline_mode<synchronous>, transform_indices = @transform_2, window_bounds = array<i64: 770, 128>}, {pipeline_mode = #tpu.pipeline_mode<synchronous>, transform_indices = @transform_3, window_bounds = array<i64: 8, 128>}, {pipeline_mode = #tpu.pipeline_mode<synchronous>, transform_indices = @transform_4, window_bounds = array<i64: 2, 6>}]} {
    %c0 = arith.constant 0 : index
    %c0_0 = arith.constant 0 : index
    %0 = vector.load %arg1[%c0, %c0_0] : memref<98x256xbf16, #tpu.memory_space<vmem>>, vector<98x256xbf16>
    %c0_1 = arith.constant 0 : index
    %c0_2 = arith.constant 0 : index
    %1 = vector.load %arg3[%c0_1, %c0_2] : memref<770x128xbf16, #tpu.memory_space<vmem>>, vector<256x16xbf16>
    %cst = arith.constant dense<0.000000e+00> : vector<98x16xf32>
    %2 = tpu.matmul %0, %1, %cst {dimension_numbers = #tpu.dot_dimension_numbers<[1], [0], [0], [1], [0, 0, 1, 1], [], []>} : vector<98x256xbf16>, vector<256x16xbf16>, vector<98x16xf32> -> vector<98x16xf32>
    %cst_3 = arith.constant dense<0.000000e+00> : vector<16xf32>
    %3 = vector.multi_reduction <add>, %2, %cst_3 [0] : vector<98x16xf32> to vector<16xf32>
    %4 = vector.shape_cast %3 : vector<16xf32> to vector<1x16xf32>
    %5 = arith.mulf %2, %2 : vector<98x16xf32>
    %cst_4 = arith.constant dense<0.000000e+00> : vector<16xf32>
    %6 = vector.multi_reduction <add>, %5, %cst_4 [0] : vector<98x16xf32> to vector<16xf32>
    %7 = vector.shape_cast %6 : vector<16xf32> to vector<1x16xf32>
    %cst_5 = arith.constant 0.0102040814 : f32
    %8 = vector.broadcast %cst_5 : f32 to vector<1x16xf32>
    %9 = arith.mulf %4, %8 : vector<1x16xf32>
    %cst_6 = arith.constant 0.0102040814 : f32
    %10 = vector.broadcast %cst_6 : f32 to vector<1x16xf32>
    %11 = arith.mulf %7, %10 : vector<1x16xf32>
    %12 = arith.mulf %9, %9 : vector<1x16xf32>
    %13 = arith.subf %11, %12 : vector<1x16xf32>
    %c0_7 = arith.constant 0 : index
    %c0_8 = arith.constant 0 : index
    %14 = vector.load %arg4[%c0_7, %c0_8] : memref<8x128xf32, #tpu.memory_space<vmem>>, vector<1x16xf32>
    %cst_9 = arith.constant 9.99999974E-6 : f32
    %15 = vector.broadcast %cst_9 : f32 to vector<1x16xf32>
    %16 = arith.addf %13, %15 : vector<1x16xf32>
    %17 = math.rsqrt %16 : vector<1x16xf32>
    %18 = arith.mulf %14, %17 : vector<1x16xf32>
    %c1 = arith.constant 1 : index
    %c0_10 = arith.constant 0 : index
    %19 = vector.load %arg4[%c1, %c0_10] : memref<8x128xf32, #tpu.memory_space<vmem>>, vector<1x16xf32>
    %20 = arith.mulf %9, %18 : vector<1x16xf32>
    %21 = arith.subf %19, %20 : vector<1x16xf32>
    %22 = vector.broadcast %18 : vector<1x16xf32> to vector<98x16xf32>
    %23 = arith.mulf %2, %22 : vector<98x16xf32>
    %24 = vector.broadcast %21 : vector<1x16xf32> to vector<98x16xf32>
    %25 = arith.addf %23, %24 : vector<98x16xf32>
    %cst_11 = arith.constant 0.000000e+00 : f32
    %26 = vector.broadcast %cst_11 : f32 to vector<98x16xf32>
    %27 = arith.maximumf %25, %26 : vector<98x16xf32>
    %28 = arith.truncf %27 : vector<98x16xf32> to vector<98x16xbf16>
    %c256 = arith.constant 256 : index
    %c0_12 = arith.constant 0 : index
    %29 = vector.load %arg3[%c256, %c0_12] : memref<770x128xbf16, #tpu.memory_space<vmem>>, vector<128x98xbf16>
    %cst_13 = arith.constant dense<0.000000e+00> : vector<128x16xf32>
    %30 = tpu.matmul %29, %28, %cst_13 {dimension_numbers = #tpu.dot_dimension_numbers<[1], [0], [0], [1], [0, 0, 1, 1], [], []>} : vector<128x98xbf16>, vector<98x16xbf16>, vector<128x16xf32> -> vector<128x16xf32>
    %31 = vector.extract_strided_slice %30 {offsets = [0, 0], sizes = [8, 16], strides = [1, 1]} : vector<128x16xf32> to vector<8x16xf32>
    %32 = arith.truncf %31 : vector<8x16xf32> to vector<8x16xbf16>
    %c0_14 = arith.constant 0 : index
    %c0_15 = arith.constant 0 : index
    %33 = vector.load %arg6[%c0_14, %c0_15] : memref<8x256xbf16, #tpu.memory_space<vmem>>, vector<8x16xbf16>
    tpu.vector_store %arg6[%c0_14, %c0_15], %32 {strides = array<i32>} : memref<8x256xbf16, #tpu.memory_space<vmem>>, vector<8x16xbf16>,
    %34 = vector.extract_strided_slice %30 {offsets = [8, 0], sizes = [8, 16], strides = [1, 1]} : vector<128x16xf32> to vector<8x16xf32>
    %35 = arith.truncf %34 : vector<8x16xf32> to vector<8x16xbf16>
    %c0_16 = arith.constant 0 : index
    %c16 = arith.constant 16 : index
    %36 = vector.load %arg6[%c0_16, %c16] : memref<8x256xbf16, #tpu.memory_space<vmem>>, vector<8x16xbf16>
    tpu.vector_store %arg6[%c0_16, %c16], %35 {strides = array<i32>} : memref<8x256xbf16, #tpu.memory_space<vmem>>, vector<8x16xbf16>,
    %37 = vector.extract_strided_slice %30 {offsets = [16, 0], sizes = [8, 16], strides = [1, 1]} : vector<128x16xf32> to vector<8x16xf32>
    %38 = arith.truncf %37 : vector<8x16xf32> to vector<8x16xbf16>
    %c0_17 = arith.constant 0 : index
    %c32 = arith.constant 32 : index
    %39 = vector.load %arg6[%c0_17, %c32] : memref<8x256xbf16, #tpu.memory_space<vmem>>, vector<8x16xbf16>
    tpu.vector_store %arg6[%c0_17, %c32], %38 {strides = array<i32>} : memref<8x256xbf16, #tpu.memory_space<vmem>>, vector<8x16xbf16>,
    %40 = vector.extract_strided_slice %30 {offsets = [24, 0], sizes = [8, 16], strides = [1, 1]} : vector<128x16xf32> to vector<8x16xf32>
    %41 = arith.truncf %40 : vector<8x16xf32> to vector<8x16xbf16>
    %c0_18 = arith.constant 0 : index
    %c48 = arith.constant 48 : index
    %42 = vector.load %arg6[%c0_18, %c48] : memref<8x256xbf16, #tpu.memory_space<vmem>>, vector<8x16xbf16>
    tpu.vector_store %arg6[%c0_18, %c48], %41 {strides = array<i32>} : memref<8x256xbf16, #tpu.memory_space<vmem>>, vector<8x16xbf16>,
    %43 = vector.extract_strided_slice %30 {offsets = [32, 0], sizes = [8, 16], strides = [1, 1]} : vector<128x16xf32> to vector<8x16xf32>
    %44 = arith.truncf %43 : vector<8x16xf32> to vector<8x16xbf16>
    %c0_19 = arith.constant 0 : index
    %c64 = arith.constant 64 : index
    %45 = vector.load %arg6[%c0_19, %c64] : memref<8x256xbf16, #tpu.memory_space<vmem>>, vector<8x16xbf16>
    tpu.vector_store %arg6[%c0_19, %c64], %44 {strides = array<i32>} : memref<8x256xbf16, #tpu.memory_space<vmem>>, vector<8x16xbf16>,
    %46 = vector.extract_strided_slice %30 {offsets = [40, 0], sizes = [8, 16], strides = [1, 1]} : vector<128x16xf32> to vector<8x16xf32>
    %47 = arith.truncf %46 : vector<8x16xf32> to vector<8x16xbf16>
    %c0_20 = arith.constant 0 : index
    %c80 = arith.constant 80 : index
    %48 = vector.load %arg6[%c0_20, %c80] : memref<8x256xbf16, #tpu.memory_space<vmem>>, vector<8x16xbf16>
    tpu.vector_store %arg6[%c0_20, %c80], %47 {strides = array<i32>} : memref<8x256xbf16, #tpu.memory_space<vmem>>, vector<8x16xbf16>,
    %49 = vector.extract_strided_slice %30 {offsets = [48, 0], sizes = [8, 16], strides = [1, 1]} : vector<128x16xf32> to vector<8x16xf32>
    %50 = arith.truncf %49 : vector<8x16xf32> to vector<8x16xbf16>
    %c0_21 = arith.constant 0 : index
    %c96 = arith.constant 96 : index
    %51 = vector.load %arg6[%c0_21, %c96] : memref<8x256xbf16, #tpu.memory_space<vmem>>, vector<8x16xbf16>
    tpu.vector_store %arg6[%c0_21, %c96], %50 {strides = array<i32>} : memref<8x256xbf16, #tpu.memory_space<vmem>>, vector<8x16xbf16>,
    %52 = vector.extract_strided_slice %30 {offsets = [56, 0], sizes = [8, 16], strides = [1, 1]} : vector<128x16xf32> to vector<8x16xf32>
    %53 = arith.truncf %52 : vector<8x16xf32> to vector<8x16xbf16>
    %c0_22 = arith.constant 0 : index
    %c112 = arith.constant 112 : index
    %54 = vector.load %arg6[%c0_22, %c112] : memref<8x256xbf16, #tpu.memory_space<vmem>>, vector<8x16xbf16>
    tpu.vector_store %arg6[%c0_22, %c112], %53 {strides = array<i32>} : memref<8x256xbf16, #tpu.memory_space<vmem>>, vector<8x16xbf16>,
    %55 = vector.extract_strided_slice %30 {offsets = [64, 0], sizes = [8, 16], strides = [1, 1]} : vector<128x16xf32> to vector<8x16xf32>
    %56 = arith.truncf %55 : vector<8x16xf32> to vector<8x16xbf16>
    %c0_23 = arith.constant 0 : index
    %c128 = arith.constant 128 : index
    %57 = vector.load %arg6[%c0_23, %c128] : memref<8x256xbf16, #tpu.memory_space<vmem>>, vector<8x16xbf16>
    tpu.vector_store %arg6[%c0_23, %c128], %56 {strides = array<i32>} : memref<8x256xbf16, #tpu.memory_space<vmem>>, vector<8x16xbf16>,
    %58 = vector.extract_strided_slice %30 {offsets = [72, 0], sizes = [8, 16], strides = [1, 1]} : vector<128x16xf32> to vector<8x16xf32>
    %59 = arith.truncf %58 : vector<8x16xf32> to vector<8x16xbf16>
    %c0_24 = arith.constant 0 : index
    %c144 = arith.constant 144 : index
    %60 = vector.load %arg6[%c0_24, %c144] : memref<8x256xbf16, #tpu.memory_space<vmem>>, vector<8x16xbf16>
    tpu.vector_store %arg6[%c0_24, %c144], %59 {strides = array<i32>} : memref<8x256xbf16, #tpu.memory_space<vmem>>, vector<8x16xbf16>,
    %61 = vector.extract_strided_slice %30 {offsets = [80, 0], sizes = [8, 16], strides = [1, 1]} : vector<128x16xf32> to vector<8x16xf32>
    %62 = arith.truncf %61 : vector<8x16xf32> to vector<8x16xbf16>
    %c0_25 = arith.constant 0 : index
    %c160 = arith.constant 160 : index
    %63 = vector.load %arg6[%c0_25, %c160] : memref<8x256xbf16, #tpu.memory_space<vmem>>, vector<8x16xbf16>
    tpu.vector_store %arg6[%c0_25, %c160], %62 {strides = array<i32>} : memref<8x256xbf16, #tpu.memory_space<vmem>>, vector<8x16xbf16>,
    %64 = vector.extract_strided_slice %30 {offsets = [88, 0], sizes = [8, 16], strides = [1, 1]} : vector<128x16xf32> to vector<8x16xf32>
    %65 = arith.truncf %64 : vector<8x16xf32> to vector<8x16xbf16>
    %c0_26 = arith.constant 0 : index
    %c176 = arith.constant 176 : index
    %66 = vector.load %arg6[%c0_26, %c176] : memref<8x256xbf16, #tpu.memory_space<vmem>>, vector<8x16xbf16>
    tpu.vector_store %arg6[%c0_26, %c176], %65 {strides = array<i32>} : memref<8x256xbf16, #tpu.memory_space<vmem>>, vector<8x16xbf16>,
    %67 = vector.extract_strided_slice %30 {offsets = [96, 0], sizes = [8, 16], strides = [1, 1]} : vector<128x16xf32> to vector<8x16xf32>
    %68 = arith.truncf %67 : vector<8x16xf32> to vector<8x16xbf16>
    %c0_27 = arith.constant 0 : index
    %c192 = arith.constant 192 : index
    %69 = vector.load %arg6[%c0_27, %c192] : memref<8x256xbf16, #tpu.memory_space<vmem>>, vector<8x16xbf16>
    tpu.vector_store %arg6[%c0_27, %c192], %68 {strides = array<i32>} : memref<8x256xbf16, #tpu.memory_space<vmem>>, vector<8x16xbf16>,
    %70 = vector.extract_strided_slice %30 {offsets = [104, 0], sizes = [8, 16], strides = [1, 1]} : vector<128x16xf32> to vector<8x16xf32>
    %71 = arith.truncf %70 : vector<8x16xf32> to vector<8x16xbf16>
    %c0_28 = arith.constant 0 : index
    %c208 = arith.constant 208 : index
    %72 = vector.load %arg6[%c0_28, %c208] : memref<8x256xbf16, #tpu.memory_space<vmem>>, vector<8x16xbf16>
    tpu.vector_store %arg6[%c0_28, %c208], %71 {strides = array<i32>} : memref<8x256xbf16, #tpu.memory_space<vmem>>, vector<8x16xbf16>,
    %73 = vector.extract_strided_slice %30 {offsets = [112, 0], sizes = [8, 16], strides = [1, 1]} : vector<128x16xf32> to vector<8x16xf32>
    %74 = arith.truncf %73 : vector<8x16xf32> to vector<8x16xbf16>
    %c0_29 = arith.constant 0 : index
    %c224 = arith.constant 224 : index
    %75 = vector.load %arg6[%c0_29, %c224] : memref<8x256xbf16, #tpu.memory_space<vmem>>, vector<8x16xbf16>
    tpu.vector_store %arg6[%c0_29, %c224], %74 {strides = array<i32>} : memref<8x256xbf16, #tpu.memory_space<vmem>>, vector<8x16xbf16>,
    %76 = vector.extract_strided_slice %30 {offsets = [120, 0], sizes = [8, 16], strides = [1, 1]} : vector<128x16xf32> to vector<8x16xf32>
    %77 = arith.truncf %76 : vector<8x16xf32> to vector<8x16xbf16>
    %c0_30 = arith.constant 0 : index
    %c240 = arith.constant 240 : index
    %78 = vector.load %arg6[%c0_30, %c240] : memref<8x256xbf16, #tpu.memory_space<vmem>>, vector<8x16xbf16>
    tpu.vector_store %arg6[%c0_30, %c240], %77 {strides = array<i32>} : memref<8x256xbf16, #tpu.memory_space<vmem>>, vector<8x16xbf16>,
    %c0_31 = arith.constant 0 : index
    %c0_32 = arith.constant 0 : index
    %79 = vector.load %arg6[%c0_31, %c0_32] : memref<8x256xbf16, #tpu.memory_space<vmem>>, vector<8x256xbf16>
    %c384 = arith.constant 384 : index
    %c0_33 = arith.constant 0 : index
    %80 = vector.load %arg3[%c384, %c0_33] : memref<770x128xbf16, #tpu.memory_space<vmem>>, vector<256x32xbf16>
    %cst_34 = arith.constant dense<0.000000e+00> : vector<8x32xf32>
    %81 = tpu.matmul %79, %80, %cst_34 {dimension_numbers = #tpu.dot_dimension_numbers<[1], [0], [0], [1], [0, 0, 1, 1], [], []>} : vector<8x256xbf16>, vector<256x32xbf16>, vector<8x32xf32> -> vector<8x32xf32>
    %cst_35 = arith.constant dense<0.000000e+00> : vector<32xf32>
    %82 = vector.multi_reduction <add>, %81, %cst_35 [0] : vector<8x32xf32> to vector<32xf32>
    %83 = vector.shape_cast %82 : vector<32xf32> to vector<1x32xf32>
    %84 = arith.mulf %81, %81 : vector<8x32xf32>
    %cst_36 = arith.constant dense<0.000000e+00> : vector<32xf32>
    %85 = vector.multi_reduction <add>, %84, %cst_36 [0] : vector<8x32xf32> to vector<32xf32>
    %86 = vector.shape_cast %85 : vector<32xf32> to vector<1x32xf32>
    %cst_37 = arith.constant 1.250000e-01 : f32
    %87 = vector.broadcast %cst_37 : f32 to vector<1x32xf32>
    %88 = arith.mulf %83, %87 : vector<1x32xf32>
    %cst_38 = arith.constant 1.250000e-01 : f32
    %89 = vector.broadcast %cst_38 : f32 to vector<1x32xf32>
    %90 = arith.mulf %86, %89 : vector<1x32xf32>
    %91 = arith.mulf %88, %88 : vector<1x32xf32>
    %92 = arith.subf %90, %91 : vector<1x32xf32>
    %c2 = arith.constant 2 : index
    %c0_39 = arith.constant 0 : index
    %93 = vector.load %arg4[%c2, %c0_39] : memref<8x128xf32, #tpu.memory_space<vmem>>, vector<1x32xf32>
    %cst_40 = arith.constant 9.99999974E-6 : f32
    %94 = vector.broadcast %cst_40 : f32 to vector<1x32xf32>
    %95 = arith.addf %92, %94 : vector<1x32xf32>
    %96 = math.rsqrt %95 : vector<1x32xf32>
    %97 = arith.mulf %93, %96 : vector<1x32xf32>
    %c3 = arith.constant 3 : index
    %c0_41 = arith.constant 0 : index
    %98 = vector.load %arg4[%c3, %c0_41] : memref<8x128xf32, #tpu.memory_space<vmem>>, vector<1x32xf32>
    %99 = arith.mulf %88, %97 : vector<1x32xf32>
    %100 = arith.subf %98, %99 : vector<1x32xf32>
    %101 = vector.broadcast %97 : vector<1x32xf32> to vector<8x32xf32>
    %102 = arith.mulf %81, %101 : vector<8x32xf32>
    %103 = vector.broadcast %100 : vector<1x32xf32> to vector<8x32xf32>
    %104 = arith.addf %102, %103 : vector<8x32xf32>
    %cst_42 = arith.constant 0.000000e+00 : f32
    %105 = vector.broadcast %cst_42 : f32 to vector<8x32xf32>
    %106 = arith.maximumf %104, %105 : vector<8x32xf32>
    %107 = vector.extract_strided_slice %106 {offsets = [0, 0], sizes = [2, 32], strides = [1, 1]} : vector<8x32xf32> to vector<2x32xf32>
    %108 = arith.truncf %107 : vector<2x32xf32> to vector<2x32xbf16>
    %c0_43 = arith.constant 0 : index
    %c0_44 = arith.constant 0 : index
    %109 = vector.load %arg7[%c0_43, %c0_44] : memref<2x130xbf16, #tpu.memory_space<vmem>>, vector<2x32xbf16>
    tpu.vector_store %arg7[%c0_43, %c0_44], %108 {strides = array<i32>} : memref<2x130xbf16, #tpu.memory_space<vmem>>, vector<2x32xbf16>,
    %110 = vector.extract_strided_slice %106 {offsets = [2, 0], sizes = [2, 32], strides = [1, 1]} : vector<8x32xf32> to vector<2x32xf32>
    %111 = arith.truncf %110 : vector<2x32xf32> to vector<2x32xbf16>
    %c0_45 = arith.constant 0 : index
    %c32_46 = arith.constant 32 : index
    %112 = vector.load %arg7[%c0_45, %c32_46] : memref<2x130xbf16, #tpu.memory_space<vmem>>, vector<2x32xbf16>
    tpu.vector_store %arg7[%c0_45, %c32_46], %111 {strides = array<i32>} : memref<2x130xbf16, #tpu.memory_space<vmem>>, vector<2x32xbf16>,
    %113 = vector.extract_strided_slice %106 {offsets = [4, 0], sizes = [2, 32], strides = [1, 1]} : vector<8x32xf32> to vector<2x32xf32>
    %114 = arith.truncf %113 : vector<2x32xf32> to vector<2x32xbf16>
    %c0_47 = arith.constant 0 : index
    %c64_48 = arith.constant 64 : index
    %115 = vector.load %arg7[%c0_47, %c64_48] : memref<2x130xbf16, #tpu.memory_space<vmem>>, vector<2x32xbf16>
    tpu.vector_store %arg7[%c0_47, %c64_48], %114 {strides = array<i32>} : memref<2x130xbf16, #tpu.memory_space<vmem>>, vector<2x32xbf16>,
    %116 = vector.extract_strided_slice %106 {offsets = [6, 0], sizes = [2, 32], strides = [1, 1]} : vector<8x32xf32> to vector<2x32xf32>
    %117 = arith.truncf %116 : vector<2x32xf32> to vector<2x32xbf16>
    %c0_49 = arith.constant 0 : index
    %c96_50 = arith.constant 96 : index
    %118 = vector.load %arg7[%c0_49, %c96_50] : memref<2x130xbf16, #tpu.memory_space<vmem>>, vector<2x32xbf16>
    tpu.vector_store %arg7[%c0_49, %c96_50], %117 {strides = array<i32>} : memref<2x130xbf16, #tpu.memory_space<vmem>>, vector<2x32xbf16>,
    %c0_51 = arith.constant 0 : index
    %c0_52 = arith.constant 0 : index
    %119 = vector.load %arg2[%c0_51, %c0_52] : memref<2x2xf32, #tpu.memory_space<vmem>>, vector<2x2xf32>
    %120 = arith.truncf %119 : vector<2x2xf32> to vector<2x2xbf16>
    %c0_53 = arith.constant 0 : index
    %c128_54 = arith.constant 128 : index
    %121 = vector.load %arg7[%c0_53, %c128_54] : memref<2x130xbf16, #tpu.memory_space<vmem>>, vector<2x2xbf16>
    tpu.vector_store %arg7[%c0_53, %c128_54], %120 {strides = array<i32>} : memref<2x130xbf16, #tpu.memory_space<vmem>>, vector<2x2xbf16>,
    %c0_55 = arith.constant 0 : index
    %c0_56 = arith.constant 0 : index
    %122 = vector.load %arg7[%c0_55, %c0_56] : memref<2x130xbf16, #tpu.memory_space<vmem>>, vector<2x130xbf16>
    %c640 = arith.constant 640 : index
    %c0_57 = arith.constant 0 : index
    %123 = vector.load %arg3[%c640, %c0_57] : memref<770x128xbf16, #tpu.memory_space<vmem>>, vector<130x6xbf16>
    %cst_58 = arith.constant dense<0.000000e+00> : vector<2x6xf32>
    %124 = tpu.matmul %122, %123, %cst_58 {dimension_numbers = #tpu.dot_dimension_numbers<[1], [0], [0], [1], [0, 0, 1, 1], [], []>} : vector<2x130xbf16>, vector<130x6xbf16>, vector<2x6xf32> -> vector<2x6xf32>
    %c4 = arith.constant 4 : index
    %c0_59 = arith.constant 0 : index
    %125 = vector.load %arg4[%c4, %c0_59] : memref<8x128xf32, #tpu.memory_space<vmem>>, vector<1x6xf32>
    %126 = vector.broadcast %125 : vector<1x6xf32> to vector<2x6xf32>
    %127 = arith.addf %124, %126 : vector<2x6xf32>
    %c0_60 = arith.constant 0 : index
    %c0_61 = arith.constant 0 : index
    %128 = vector.load %arg5[%c0_60, %c0_61] : memref<2x6xf32, #tpu.memory_space<vmem>>, vector<2x6xf32>
    tpu.vector_store %arg5[%c0_60, %c0_61], %127 {strides = array<i32>} : memref<2x6xf32, #tpu.memory_space<vmem>>, vector<2x6xf32>,
    return
  }
  func.func @transform_0(%arg0: i32) -> (i32, i32) {
    %c0_i32 = arith.constant 0 : i32
    %c0_i32_0 = arith.constant 0 : i32
    %c0_i32_1 = arith.constant 0 : i32
    return %c0_i32, %c0_i32_0 : i32, i32
  }
  func.func @transform_1(%arg0: i32) -> (i32, i32) {
    %c0_i32 = arith.constant 0 : i32
    %c0_i32_0 = arith.constant 0 : i32
    %c0_i32_1 = arith.constant 0 : i32
    return %c0_i32, %c0_i32_0 : i32, i32
  }
  func.func @transform_2(%arg0: i32) -> (i32, i32) {
    %c0_i32 = arith.constant 0 : i32
    %c0_i32_0 = arith.constant 0 : i32
    %c0_i32_1 = arith.constant 0 : i32
    return %c0_i32, %c0_i32_0 : i32, i32
  }
  func.func @transform_3(%arg0: i32) -> (i32, i32) {
    %c0_i32 = arith.constant 0 : i32
    %c0_i32_0 = arith.constant 0 : i32
    %c0_i32_1 = arith.constant 0 : i32
    return %c0_i32, %c0_i32_0 : i32, i32
  }
  func.func @transform_4(%arg0: i32) -> (i32, i32) {
    %c0_i32 = arith.constant 0 : i32
    %c0_i32_0 = arith.constant 0 : i32
    %c0_i32_1 = arith.constant 0 : i32
    return %c0_i32, %c0_i32_0 : i32, i32
  }
}

</mosaic_0001>

<llo_original>
// kernel: dqn_forward.1
$region0: #{dqn_forward.1}
  #allocation0 [shape = 'u32[]', space=smem, size = 0x4, offset = 0x4, fixed_abs, tag = 'smem constant byte address 0x4 - core index']
  #allocation1 [shape = 'u32[144,128]{1,0:T(1,128)}', space=vmem, size = 0x12000, scoped, tag = 'internal scratch']
  #allocation2 [shape = 'bf16[8,256]{1,0:T(8,128)(2,1)}', space=vmem, size = 0x1000, scoped, tag = 'scratch operand']
  #allocation3 [shape = 'bf16[2,130]{1,0:T(2,128)(2,1)}', space=vmem, size = 0x400, scoped, tag = 'scratch operand']
  %s0 = inlined_call_operand.vmem [shape: bf16[98,256], index: 0, kind: input, shape index: {}]
  %s1 = inlined_call_operand.vmem [shape: f32[2,2], index: 1, kind: input, shape index: {}]
  %s2 = inlined_call_operand.vmem [shape: bf16[770,128], index: 2, kind: input, shape index: {}]
  %s3 = inlined_call_operand.vmem [shape: f32[8,128], index: 3, kind: input, shape index: {}]
  %s4 = inlined_call_operand.hbm [shape: f32[2,6], index: 4, kind: output, shape index: {}]
  %s5 = sld [smem:[#allocation0]]
  $region26: #{dqn_forward.1} parent=0
    _
  %s7 = ssub.s32 1, %s5
  %s8 = scalar_select 0, %s7, %s5
  $region1: #{dqn_forward.1} parent=0
    #allocation4 [shape = 'u8[1024]{0}', space=vmem, size = 0x400, scoped, tag = 'output window, operand 0, single buffered']
    #allocation5 [shape = 's32[1]{0}', space=sflag, size = 0x4, scoped, tag = 'scoped memory for dqn_forward.1']
    %9 = vsyncpa [#allocation5], 0
    // Predicated region
    $region2: #{dqn_forward.1} parent=1 // pred_check
      _
    $region3: #{dqn_forward.1} parent=1 // pred_check_branch
      %11 = sbr.rel (0) target = $region5
    $region4: #{dqn_forward.1} parent=1 // pred_region
      _
    $region5: #{dqn_forward.1} parent=1 // pred_fallthru
      _
    // Predicated region
    $region6: #{dqn_forward.1} parent=1 // pred_check
      _
    $region7: #{dqn_forward.1} parent=1 // pred_check_branch
      %13 = sbr.rel (0) target = $region9
    $region8: #{dqn_forward.1} parent=1 // pred_region
      _
    $region9: #{dqn_forward.1} parent=1 // pred_fallthru
      _
    // Predicated region
    $region10: #{dqn_forward.1} parent=1 // pred_check
      _
    $region11: #{dqn_forward.1} parent=1 // pred_check_branch
      %15 = sbr.rel (0) target = $region13
    $region12: #{dqn_forward.1} parent=1 // pred_region
      _
    $region13: #{dqn_forward.1} parent=1 // pred_fallthru
      _
    // Predicated region
    $region14: #{dqn_forward.1} parent=1 // pred_check
      _
    $region15: #{dqn_forward.1} parent=1 // pred_check_branch
      %17 = sbr.rel (0) target = $region17
    $region16: #{dqn_forward.1} parent=1 // pred_region
      _
    $region17: #{dqn_forward.1} parent=1 // pred_fallthru
      _
    %v19 = vld [vmem:[%s0] sm:$0xff]
    %v20 = vld [vmem:[%s0 + $0x8] sm:$0xff]
    %v21 = vld [vmem:[%s0 + $0x10] sm:$0xff]
    %v22 = vld [vmem:[%s0 + $0x18] sm:$0xff]
    %v23 = vld [vmem:[%s0 + $0x20] sm:$0xff]
    %v24 = vld [vmem:[%s0 + $0x28] sm:$0xff]
    %v25 = vld [vmem:[%s0 + $0x30] sm:$0xff]
    %v26 = vld [vmem:[%s0 + $0x38] sm:$0xff]
    %v27 = vld [vmem:[%s0 + $0x40] sm:$0xff]
    %v28 = vld [vmem:[%s0 + $0x48] sm:$0xff]
    %v29 = vld [vmem:[%s0 + $0x50] sm:$0xff]
    %v30 = vld [vmem:[%s0 + $0x58] sm:$0xff]
    %v31 = vld [vmem:[%s0 + $0x60] sm:$0x11]
    %v32 = vld [vmem:[%s2] sm:$0xf]
    %v33 = vld [vmem:[%s2 + $0x4] sm:$0xf]
    %v34 = vld [vmem:[%s2 + $0x8] sm:$0xf]
    %v35 = vld [vmem:[%s2 + $0xc] sm:$0xf]
    %v36 = vld [vmem:[%s2 + $0x10] sm:$0xf]
    %v37 = vld [vmem:[%s2 + $0x14] sm:$0xf]
    %v38 = vld [vmem:[%s2 + $0x18] sm:$0xf]
    %v39 = vld [vmem:[%s2 + $0x1c] sm:$0xf]
    %v40 = vld [vmem:[%s2 + $0x20] sm:$0xf]
    %v41 = vld [vmem:[%s2 + $0x24] sm:$0xf]
    %v42 = vld [vmem:[%s2 + $0x28] sm:$0xf]
    %v43 = vld [vmem:[%s2 + $0x2c] sm:$0xf]
    %v44 = vld [vmem:[%s2 + $0x30] sm:$0xf]
    %v45 = vld [vmem:[%s2 + $0x34] sm:$0xf]
    %v46 = vld [vmem:[%s2 + $0x38] sm:$0xf]
    %v47 = vld [vmem:[%s2 + $0x3c] sm:$0xf]
    %v48 = vld [vmem:[%s2 + $0x40] sm:$0xf]
    %v49 = vld [vmem:[%s2 + $0x44] sm:$0xf]
    %v50 = vld [vmem:[%s2 + $0x48] sm:$0xf]
    %v51 = vld [vmem:[%s2 + $0x4c] sm:$0xf]
    %v52 = vld [vmem:[%s2 + $0x50] sm:$0xf]
    %v53 = vld [vmem:[%s2 + $0x54] sm:$0xf]
    %v54 = vld [vmem:[%s2 + $0x58] sm:$0xf]
    %v55 = vld [vmem:[%s2 + $0x5c] sm:$0xf]
    %v56 = vld [vmem:[%s2 + $0x60] sm:$0xf]
    %v57 = vld [vmem:[%s2 + $0x64] sm:$0xf]
    %v58 = vld [vmem:[%s2 + $0x68] sm:$0xf]
    %v59 = vld [vmem:[%s2 + $0x6c] sm:$0xf]
    %v60 = vld [vmem:[%s2 + $0x70] sm:$0xf]
    %v61 = vld [vmem:[%s2 + $0x74] sm:$0xf]
    %v62 = vld [vmem:[%s2 + $0x78] sm:$0xf]
    %v63 = vld [vmem:[%s2 + $0x7c] sm:$0xf]
    %v77 = vunpack.c.l.b16 %v19
    %v78 = vunpack.c.h.b16 %v19
    %v79 = vunpack.c.l.b16 %v20
    %v80 = vunpack.c.h.b16 %v20
    %v81 = vunpack.c.l.b16 %v21
    %v82 = vunpack.c.h.b16 %v21
    %v83 = vunpack.c.l.b16 %v22
    %v84 = vunpack.c.h.b16 %v22
    %v85 = vunpack.c.l.b16 %v23
    %v86 = vunpack.c.h.b16 %v23
    %v87 = vunpack.c.l.b16 %v24
    %v88 = vunpack.c.h.b16 %v24
    %v89 = vunpack.c.l.b16 %v25
    %v90 = vunpack.c.h.b16 %v25
    %v91 = vunpack.c.l.b16 %v26
    %v92 = vunpack.c.h.b16 %v26
    %v93 = vunpack.c.l.b16 %v27
    %v94 = vunpack.c.h.b16 %v27
    %v95 = vunpack.c.l.b16 %v28
    %v96 = vunpack.c.h.b16 %v28
    %v97 = vunpack.c.l.b16 %v29
    %v98 = vunpack.c.h.b16 %v29
    %v99 = vunpack.c.l.b16 %v30
    %v100 = vunpack.c.h.b16 %v30
    %v101 = vunpack.c.l.b16 %v31
    %v102 = vunpack.c.h.b16 %v31
    %v103 = vpack.c.b16 %v79, %v77
    %v104 = vpack.c.b16 %v80, %v78
    %v105 = vpack.c.b16 %v83, %v81
    %v106 = vpack.c.b16 %v84, %v82
    %v107 = vpack.c.b16 %v87, %v85
    %v108 = vpack.c.b16 %v88, %v86
    %v109 = vpack.c.b16 %v91, %v89
    %v110 = vpack.c.b16 %v92, %v90
    %v111 = vpack.c.b16 %v95, %v93
    %v112 = vpack.c.b16 %v96, %v94
    %v113 = vpack.c.b16 %v99, %v97
    %v114 = vpack.c.b16 %v100, %v98
    %v115 = vpack.c.b16 %v101, %v101
    %v116 = vpack.c.b16 %v102, %v102
    %v163 = vunpack.c.l.b16 %v32
    %v164 = vunpack.c.l.b16 %v33
    %v165 = vunpack.c.l.b16 %v34
    %v166 = vunpack.c.l.b16 %v35
    %v167 = vunpack.c.l.b16 %v36
    %v168 = vunpack.c.l.b16 %v37
    %v169 = vunpack.c.l.b16 %v38
    %v170 = vunpack.c.l.b16 %v39
    %v171 = vunpack.c.l.b16 %v40
    %v172 = vunpack.c.l.b16 %v41
    %v173 = vunpack.c.l.b16 %v42
    %v174 = vunpack.c.l.b16 %v43
    %v175 = vunpack.c.l.b16 %v44
    %v176 = vunpack.c.l.b16 %v45
    %v177 = vunpack.c.l.b16 %v46
    %v178 = vunpack.c.l.b16 %v47
    %v179 = vunpack.c.l.b16 %v48
    %v180 = vunpack.c.l.b16 %v49
    %v181 = vunpack.c.l.b16 %v50
    %v182 = vunpack.c.l.b16 %v51
    %v183 = vunpack.c.l.b16 %v52
    %v184 = vunpack.c.l.b16 %v53
    %v185 = vunpack.c.l.b16 %v54
    %v186 = vunpack.c.l.b16 %v55
    %v187 = vunpack.c.l.b16 %v56
    %v188 = vunpack.c.l.b16 %v57
    %v189 = vunpack.c.l.b16 %v58
    %v190 = vunpack.c.l.b16 %v59
    %v191 = vunpack.c.l.b16 %v60
    %v192 = vunpack.c.l.b16 %v61
    %v193 = vunpack.c.l.b16 %v62
    %v194 = vunpack.c.l.b16 %v63
    %v195 = vpack.c.b16 %v164, %v163
    %v196 = vpack.c.b16 %v166, %v165
    %v197 = vpack.c.b16 %v168, %v167
    %v198 = vpack.c.b16 %v170, %v169
    %v199 = vpack.c.b16 %v172, %v171
    %v200 = vpack.c.b16 %v174, %v173
    %v201 = vpack.c.b16 %v176, %v175
    %v202 = vpack.c.b16 %v178, %v177
    %v203 = vpack.c.b16 %v180, %v179
    %v204 = vpack.c.b16 %v182, %v181
    %v205 = vpack.c.b16 %v184, %v183
    %v206 = vpack.c.b16 %v186, %v185
    %v207 = vpack.c.b16 %v188, %v187
    %v208 = vpack.c.b16 %v190, %v189
    %v209 = vpack.c.b16 %v192, %v191
    %v210 = vpack.c.b16 %v194, %v193
    %227 = vmatprep.subr.bf16.mxu0 0
    %228 = vmatpush1.bf16.msra.mxu0 %v202
    %229 = vmatprep.subr.bf16.mxu0 0
    %230 = vmatpush1.bf16.msra.mxu0 %v201
    %231 = vmatprep.subr.bf16.mxu0 0
    %232 = vmatpush1.bf16.msra.mxu0 %v200
    %233 = vmatprep.subr.bf16.mxu0 0
    %234 = vmatpush1.bf16.msra.mxu0 %v199
    %235 = vmatprep.subr.bf16.mxu0 0
    %236 = vmatpush1.bf16.msra.mxu0 %v198
    %237 = vmatprep.subr.bf16.mxu0 0
    %238 = vmatpush1.bf16.msra.mxu0 %v197
    %239 = vmatprep.subr.bf16.mxu0 0
    %240 = vmatpush1.bf16.msra.mxu0 %v196
    %241 = vmatprep.subr.bf16.mxu0 0
    %242 = vmatpush1.bf16.msra.mxu0 %v195
    %243 = vmatprep.subr.bf16.mxu0 0
    %244 = vmatpush2.bf16.msra.mxu0 %v210
    %245 = vmatprep.subr.bf16.mxu0 0
    %246 = vmatpush2.bf16.msra.mxu0 %v209
    %247 = vmatprep.subr.bf16.mxu0 0
    %248 = vmatpush2.bf16.msra.mxu0 %v208
    %249 = vmatprep.subr.bf16.mxu0 0
    %250 = vmatpush2.bf16.msra.mxu0 %v207
    %251 = vmatprep.subr.bf16.mxu0 0
    %252 = vmatpush2.bf16.msra.mxu0 %v206
    %253 = vmatprep.subr.bf16.mxu0 0
    %254 = vmatpush2.bf16.msra.mxu0 %v205
    %255 = vmatprep.subr.bf16.mxu0 0
    %256 = vmatpush2.bf16.msra.mxu0 %v204
    %257 = vmatprep.subr.bf16.mxu0 0
    %258 = vmatpush2.bf16.msra.mxu0 %v203
    %259 = vmatprep.mubr.bf16.mxu0 %v104
    %260 = vmatmul.mubr.bf16.gmra.mxu0 %v103
    %v261 = vpop.f32.mrf.mxu0
    %v262 = vadd.f32 0.0, %v261
    %v263 = vpop.f32.mrf.mxu0
    %v264 = vpop.f32.mrf.mxu0
    %v265 = vadd.f32 0.0, %v264
    %v266 = vpop.f32.mrf.mxu0
    %267 = vmatprep.mubr.bf16.mxu0 %v106
    %268 = vmatmul.mubr.bf16.gmra.mxu0 %v105
    %v269 = vpop.f32.mrf.mxu0
    %v270 = vadd.f32 0.0, %v269
    %v271 = vpop.f32.mrf.mxu0
    %v272 = vpop.f32.mrf.mxu0
    %v273 = vadd.f32 0.0, %v272
    %v274 = vpop.f32.mrf.mxu0
    %275 = vmatprep.mubr.bf16.mxu0 %v108
    %276 = vmatmul.mubr.bf16.gmra.mxu0 %v107
    %v277 = vpop.f32.mrf.mxu0
    %v278 = vadd.f32 0.0, %v277
    %v279 = vpop.f32.mrf.mxu0
    %v280 = vpop.f32.mrf.mxu0
    %v281 = vadd.f32 0.0, %v280
    %v282 = vpop.f32.mrf.mxu0
    %283 = vmatprep.mubr.bf16.mxu0 %v110
    %284 = vmatmul.mubr.bf16.gmra.mxu0 %v109
    %v285 = vpop.f32.mrf.mxu0
    %v286 = vadd.f32 0.0, %v285
    %v287 = vpop.f32.mrf.mxu0
    %v288 = vpop.f32.mrf.mxu0
    %v289 = vadd.f32 0.0, %v288
    %v290 = vpop.f32.mrf.mxu0
    %291 = vmatprep.mubr.bf16.mxu0 %v112
    %292 = vmatmul.mubr.bf16.gmra.mxu0 %v111
    %v293 = vpop.f32.mrf.mxu0
    %v294 = vadd.f32 0.0, %v293
    %v295 = vpop.f32.mrf.mxu0
    %v296 = vpop.f32.mrf.mxu0
    %v297 = vadd.f32 0.0, %v296
    %v298 = vpop.f32.mrf.mxu0
    %299 = vmatprep.mubr.bf16.mxu0 %v114
    %300 = vmatmul.mubr.bf16.gmra.mxu0 %v113
    %v301 = vpop.f32.mrf.mxu0
    %v302 = vadd.f32 0.0, %v301
    %v303 = vpop.f32.mrf.mxu0
    %v304 = vpop.f32.mrf.mxu0
    %v305 = vadd.f32 0.0, %v304
    %v306 = vpop.f32.mrf.mxu0
    %307 = vmatprep.mubr.bf16.mxu0 %v116
    %308 = vmatmul.mubr.bf16.gmra.mxu0 %v115
    %v309 = vpop.f32.mrf.mxu0
    %v310 = vadd.f32 0.0, %v309
    %v311 = vpop.f32.mrf.mxu0
    %v312 = vpop.f32.mrf.mxu0
    %v313 = vpop.f32.mrf.mxu0
    %314 = vdwg.mxu0
    %vm315 = vcmask 130048
    %v316 = vsel %vm315, %v262, 0.0
    %v317 = vsel %vm315, %v265, 0.0
    %v318 = vadd.f32 %v316, %v317
    %v319 = vsel %vm315, %v270, 0.0
    %v320 = vadd.f32 %v318, %v319
    %v321 = vsel %vm315, %v273, 0.0
    %v322 = vadd.f32 %v320, %v321
    %v323 = vsel %vm315, %v278, 0.0
    %v324 = vadd.f32 %v322, %v323
    %v325 = vsel %vm315, %v281, 0.0
    %v326 = vadd.f32 %v324, %v325
    %v327 = vsel %vm315, %v286, 0.0
    %v328 = vadd.f32 %v326, %v327
    %v329 = vsel %vm315, %v289, 0.0
    %v330 = vadd.f32 %v328, %v329
    %v331 = vsel %vm315, %v294, 0.0
    %v332 = vadd.f32 %v330, %v331
    %v333 = vsel %vm315, %v297, 0.0
    %v334 = vadd.f32 %v332, %v333
    %v335 = vsel %vm315, %v302, 0.0
    %v336 = vadd.f32 %v334, %v335
    %v337 = vsel %vm315, %v305, 0.0
    %v338 = vadd.f32 %v336, %v337
    %vm339 = vcmask 123904
    %v340 = vsel %vm339, %v310, 0.0
    %v341 = vadd.f32 %v338, %v340
    %v342 = vrot.slane %v341, 4
    %v343 = vadd.f32 %v341, %v342
    %v344 = vrot.slane %v343, 2
    %v345 = vadd.f32 %v343, %v344
    %v346 = vrot.slane %v345, 1
    %v347 = vadd.f32 %v345, %v346
    %v348 = vmul.f32 %v262, %v262
    %v349 = vmul.f32 %v265, %v265
    %v350 = vmul.f32 %v270, %v270
    %v351 = vmul.f32 %v273, %v273
    %v352 = vmul.f32 %v278, %v278
    %v353 = vmul.f32 %v281, %v281
    %v354 = vmul.f32 %v286, %v286
    %v355 = vmul.f32 %v289, %v289
    %v356 = vmul.f32 %v294, %v294
    %v357 = vmul.f32 %v297, %v297
    %v358 = vmul.f32 %v302, %v302
    %v359 = vmul.f32 %v305, %v305
    %v360 = vmul.f32 %v310, %v310
    %v361 = vsel %vm315, %v348, 0.0
    %v362 = vsel %vm315, %v349, 0.0
    %v363 = vadd.f32 %v361, %v362
    %v364 = vsel %vm315, %v350, 0.0
    %v365 = vadd.f32 %v363, %v364
    %v366 = vsel %vm315, %v351, 0.0
    %v367 = vadd.f32 %v365, %v366
    %v368 = vsel %vm315, %v352, 0.0
    %v369 = vadd.f32 %v367, %v368
    %v370 = vsel %vm315, %v353, 0.0
    %v371 = vadd.f32 %v369, %v370
    %v372 = vsel %vm315, %v354, 0.0
    %v373 = vadd.f32 %v371, %v372
    %v374 = vsel %vm315, %v355, 0.0
    %v375 = vadd.f32 %v373, %v374
    %v376 = vsel %vm315, %v356, 0.0
    %v377 = vadd.f32 %v375, %v376
    %v378 = vsel %vm315, %v357, 0.0
    %v379 = vadd.f32 %v377, %v378
    %v380 = vsel %vm315, %v358, 0.0
    %v381 = vadd.f32 %v379, %v380
    %v382 = vsel %vm315, %v359, 0.0
    %v383 = vadd.f32 %v381, %v382
    %v384 = vsel %vm339, %v360, 0.0
    %v385 = vadd.f32 %v383, %v384
    %v386 = vrot.slane %v385, 4
    %v387 = vadd.f32 %v385, %v386
    %v388 = vrot.slane %v387, 2
    %v389 = vadd.f32 %v387, %v388
    %v390 = vrot.slane %v389, 1
    %v391 = vadd.f32 %v389, %v390
    %v392 = vmul.f32 %v347, 0.010204081
    %v393 = vmul.f32 %v391, 0.010204081
    %v394 = vmul.f32 %v392, %v392
    %v395 = vsub.f32 %v393, %v394
    %v396 = vld [vmem:[%s3] sm:$0x1]
    %v397 = vadd.f32 %v395, 1e-05
    %v398 = vrsqrt.pop %v397
    %v399 = vmul.f32 %v396, %v398
    %v400 = vld [vmem:[%s3 + $0x1] sm:$0x1]
    %v401 = vmul.f32 %v392, %v399
    %v402 = vsub.f32 %v400, %v401
    %v403 = vlaneseq
    %v404 = vshrl.u32 %v403, 7
    %v405 = vsub.s32 0, %v404
    %v406 = vrot.slane %v399, %v405
    %v407 = vmul.f32 %v262, %v406
    %v408 = vmul.f32 %v265, %v406
    %v409 = vmul.f32 %v270, %v406
    %v410 = vmul.f32 %v273, %v406
    %v411 = vmul.f32 %v278, %v406
    %v412 = vmul.f32 %v281, %v406
    %v413 = vmul.f32 %v286, %v406
    %v414 = vmul.f32 %v289, %v406
    %v415 = vmul.f32 %v294, %v406
    %v416 = vmul.f32 %v297, %v406
    %v417 = vmul.f32 %v302, %v406
    %v418 = vmul.f32 %v305, %v406
    %v419 = vmul.f32 %v310, %v406
    %v420 = vlaneseq
    %v421 = vshrl.u32 %v420, 7
    %v422 = vsub.s32 0, %v421
    %v423 = vrot.slane %v402, %v422
    %v424 = vadd.f32 %v407, %v423
    %v425 = vadd.f32 %v408, %v423
    %v426 = vadd.f32 %v409, %v423
    %v427 = vadd.f32 %v410, %v423
    %v428 = vadd.f32 %v411, %v423
    %v429 = vadd.f32 %v412, %v423
    %v430 = vadd.f32 %v413, %v423
    %v431 = vadd.f32 %v414, %v423
    %v432 = vadd.f32 %v415, %v423
    %v433 = vadd.f32 %v416, %v423
    %v434 = vadd.f32 %v417, %v423
    %v435 = vadd.f32 %v418, %v423
    %v436 = vadd.f32 %v419, %v423
    %v437 = vmax.f32 %v424, 0.0
    %v438 = vmax.f32 %v425, 0.0
    %v439 = vmax.f32 %v426, 0.0
    %v440 = vmax.f32 %v427, 0.0
    %v441 = vmax.f32 %v428, 0.0
    %v442 = vmax.f32 %v429, 0.0
    %v443 = vmax.f32 %v430, 0.0
    %v444 = vmax.f32 %v431, 0.0
    %v445 = vmax.f32 %v432, 0.0
    %v446 = vmax.f32 %v433, 0.0
    %v447 = vmax.f32 %v434, 0.0
    %v448 = vmax.f32 %v435, 0.0
    %v449 = vmax.f32 %v436, 0.0
    %v450 = vpack.c.bf16 %v438, %v437
    %v451 = vpack.c.bf16 %v440, %v439
    %v452 = vpack.c.bf16 %v442, %v441
    %v453 = vpack.c.bf16 %v444, %v443
    %v454 = vpack.c.bf16 %v446, %v445
    %v455 = vpack.c.bf16 %v448, %v447
    %v456 = vpack.c.bf16 %v449, %v449
    %v457 = vld [vmem:[%s2 + $0x80] sm:$0xf]
    %v458 = vld [vmem:[%s2 + $0x84] sm:$0xf]
    %v459 = vld [vmem:[%s2 + $0x88] sm:$0xf]
    %v460 = vld [vmem:[%s2 + $0x8c] sm:$0xf]
    %v461 = vld [vmem:[%s2 + $0x90] sm:$0xf]
    %v462 = vld [vmem:[%s2 + $0x94] sm:$0xf]
    %v463 = vld [vmem:[%s2 + $0x98] sm:$0xf]
    %v464 = vld [vmem:[%s2 + $0x9c] sm:$0xf]
    %v465 = vld [vmem:[%s2 + $0xa0] sm:$0xf]
    %v466 = vld [vmem:[%s2 + $0xa4] sm:$0xf]
    %v467 = vld [vmem:[%s2 + $0xa8] sm:$0xf]
    %v468 = vld [vmem:[%s2 + $0xac] sm:$0xf]
    %v469 = vld [vmem:[%s2 + $0xb0] sm:$0xf]
    %v470 = vld [vmem:[%s2 + $0xb4] sm:$0xf]
    %v471 = vld [vmem:[%s2 + $0xb8] sm:$0xf]
    %v472 = vld [vmem:[%s2 + $0xbc] sm:$0xf]
    %v489 = vunpack.c.l.b16 %v457
    %v490 = vunpack.c.l.b16 %v458
    %v491 = vunpack.c.l.b16 %v459
    %v492 = vunpack.c.l.b16 %v460
    %v493 = vunpack.c.l.b16 %v461
    %v494 = vunpack.c.l.b16 %v462
    %v495 = vunpack.c.l.b16 %v463
    %v496 = vunpack.c.l.b16 %v464
    %v497 = vunpack.c.l.b16 %v465
    %v498 = vunpack.c.l.b16 %v466
    %v499 = vunpack.c.l.b16 %v467
    %v500 = vunpack.c.l.b16 %v468
    %v501 = vunpack.c.l.b16 %v469
    %v502 = vunpack.c.l.b16 %v470
    %v503 = vunpack.c.l.b16 %v471
    %v504 = vunpack.c.l.b16 %v472
    %v505 = vpack.c.b16 %v490, %v489
    %v506 = vpack.c.b16 %v492, %v491
    %v507 = vpack.c.b16 %v494, %v493
    %v508 = vpack.c.b16 %v496, %v495
    %v509 = vpack.c.b16 %v498, %v497
    %v510 = vpack.c.b16 %v500, %v499
    %v511 = vpack.c.b16 %v502, %v501
    %v512 = vpack.c.b16 %v504, %v503
    %vm513 = vcmask 801792
    %v515 = vsel %vm513, %v505, 0
    %v518 = vsel %vm513, %v506, 0
    %v521 = vsel %vm513, %v507, 0
    %v524 = vsel %vm513, %v508, 0
    %v527 = vsel %vm513, %v509, 0
    %v530 = vsel %vm513, %v510, 0
    %v533 = vsel %vm513, %v511, 0
    %v536 = vsel %vm513, %v512, 0
    %vm538 = vcmask 1040384
    %v540 = vsel %vm538, %v456, 0
    %542 = vmatprep.subr.bf16.mxu0 0
    %543 = vmatpush1.bf16.msra.mxu0 0
    %544 = vmatprep.subr.bf16.mxu0 0
    %545 = vmatpush1.bf16.msra.mxu0 %v540
    %546 = vmatprep.subr.bf16.mxu0 0
    %547 = vmatpush1.bf16.msra.mxu0 %v455
    %548 = vmatprep.subr.bf16.mxu0 0
    %549 = vmatpush1.bf16.msra.mxu0 %v454
    %550 = vmatprep.subr.bf16.mxu0 0
    %551 = vmatpush1.bf16.msra.mxu0 %v453
    %552 = vmatprep.subr.bf16.mxu0 0
    %553 = vmatpush1.bf16.msra.mxu0 %v452
    %554 = vmatprep.subr.bf16.mxu0 0
    %555 = vmatpush1.bf16.msra.mxu0 %v451
    %556 = vmatprep.subr.bf16.mxu0 0
    %557 = vmatpush1.bf16.msra.mxu0 %v450
    %558 = vmatprep.subr.bf16.mxu0 0
    %559 = vmatpush2.bf16.msra.mxu0 0
    %560 = vmatprep.subr.bf16.mxu0 0
    %561 = vmatpush2.bf16.msra.mxu0 0
    %562 = vmatprep.subr.bf16.mxu0 0
    %563 = vmatpush2.bf16.msra.mxu0 0
    %564 = vmatprep.subr.bf16.mxu0 0
    %565 = vmatpush2.bf16.msra.mxu0 0
    %566 = vmatprep.subr.bf16.mxu0 0
    %567 = vmatpush2.bf16.msra.mxu0 0
    %568 = vmatprep.subr.bf16.mxu0 0
    %569 = vmatpush2.bf16.msra.mxu0 0
    %570 = vmatprep.subr.bf16.mxu0 0
    %571 = vmatpush2.bf16.msra.mxu0 0
    %572 = vmatprep.subr.bf16.mxu0 0
    %573 = vmatpush2.bf16.msra.mxu0 0
    %574 = vmatprep.mubr.bf16.mxu0 0
    %575 = vmatmul.mubr.bf16.gmra.mxu0 %v515
    %v576 = vpop.f32.mrf.mxu0
    %v577 = vadd.f32 0.0, %v576
    %v578 = vpop.f32.mrf.mxu0
    %v579 = vpop.f32.mrf.mxu0
    %v580 = vadd.f32 0.0, %v579
    %v581 = vpop.f32.mrf.mxu0
    %582 = vmatprep.mubr.bf16.mxu0 0
    %583 = vmatmul.mubr.bf16.gmra.mxu0 %v518
    %v584 = vpop.f32.mrf.mxu0
    %v585 = vadd.f32 0.0, %v584
    %v586 = vpop.f32.mrf.mxu0
    %v587 = vpop.f32.mrf.mxu0
    %v588 = vadd.f32 0.0, %v587
    %v589 = vpop.f32.mrf.mxu0
    %590 = vmatprep.mubr.bf16.mxu0 0
    %591 = vmatmul.mubr.bf16.gmra.mxu0 %v521
    %v592 = vpop.f32.mrf.mxu0
    %v593 = vadd.f32 0.0, %v592
    %v594 = vpop.f32.mrf.mxu0
    %v595 = vpop.f32.mrf.mxu0
    %v596 = vadd.f32 0.0, %v595
    %v597 = vpop.f32.mrf.mxu0
    %598 = vmatprep.mubr.bf16.mxu0 0
    %599 = vmatmul.mubr.bf16.gmra.mxu0 %v524
    %v600 = vpop.f32.mrf.mxu0
    %v601 = vadd.f32 0.0, %v600
    %v602 = vpop.f32.mrf.mxu0
    %v603 = vpop.f32.mrf.mxu0
    %v604 = vadd.f32 0.0, %v603
    %v605 = vpop.f32.mrf.mxu0
    %606 = vmatprep.mubr.bf16.mxu0 0
    %607 = vmatmul.mubr.bf16.gmra.mxu0 %v527
    %v608 = vpop.f32.mrf.mxu0
    %v609 = vadd.f32 0.0, %v608
    %v610 = vpop.f32.mrf.mxu0
    %v611 = vpop.f32.mrf.mxu0
    %v612 = vadd.f32 0.0, %v611
    %v613 = vpop.f32.mrf.mxu0
    %614 = vmatprep.mubr.bf16.mxu0 0
    %615 = vmatmul.mubr.bf16.gmra.mxu0 %v530
    %v616 = vpop.f32.mrf.mxu0
    %v617 = vadd.f32 0.0, %v616
    %v618 = vpop.f32.mrf.mxu0
    %v619 = vpop.f32.mrf.mxu0
    %v620 = vadd.f32 0.0, %v619
    %v621 = vpop.f32.mrf.mxu0
    %622 = vmatprep.mubr.bf16.mxu0 0
    %623 = vmatmul.mubr.bf16.gmra.mxu0 %v533
    %v624 = vpop.f32.mrf.mxu0
    %v625 = vadd.f32 0.0, %v624
    %v626 = vpop.f32.mrf.mxu0
    %v627 = vpop.f32.mrf.mxu0
    %v628 = vadd.f32 0.0, %v627
    %v629 = vpop.f32.mrf.mxu0
    %630 = vmatprep.mubr.bf16.mxu0 0
    %631 = vmatmul.mubr.bf16.gmra.mxu0 %v536
    %v632 = vpop.f32.mrf.mxu0
    %v633 = vadd.f32 0.0, %v632
    %v634 = vpop.f32.mrf.mxu0
    %v635 = vpop.f32.mrf.mxu0
    %v636 = vadd.f32 0.0, %v635
    %v637 = vpop.f32.mrf.mxu0
    %638 = vdwg.mxu0
    %v639 = vpack.c.bf16 %v577, %v577
    %vm640 = vcmask 125952
    %641 = vst.msk [vmem:[#allocation2] sm:$0xf] %vm640, %v639
    %v642 = vpack.c.bf16 %v580, %v580
    %v644 = vunpack.c.l.b16 %v642
    %v645 = vpack.c.b16 %v644, %v644
    %646 = vrot.lane.b32.xlu0 %v645, 16
    %v647 = vpop.permute.xlu0 %646
    %vm649 = vcmask 257152
    %650 = vst.msk [vmem:[#allocation2] sm:$0xf] %vm649, %v647
    %v651 = vpack.c.bf16 %v585, %v585
    %v653 = vunpack.c.l.b16 %v651
    %v654 = vpack.c.b16 %v653, %v653
    %655 = vrot.lane.b32.xlu0 %v654, 32
    %v656 = vpop.permute.xlu0 %655
    %vm658 = vcmask 388352
    %659 = vst.msk [vmem:[#allocation2] sm:$0xf] %vm658, %v656
    %v660 = vpack.c.bf16 %v588, %v588
    %v662 = vunpack.c.l.b16 %v660
    %v663 = vpack.c.b16 %v662, %v662
    %664 = vrot.lane.b32.xlu0 %v663, 48
    %v665 = vpop.permute.xlu0 %664
    %vm667 = vcmask 519552
    %668 = vst.msk [vmem:[#allocation2] sm:$0xf] %vm667, %v665
    %v669 = vpack.c.bf16 %v593, %v593
    %v671 = vunpack.c.l.b16 %v669
    %v672 = vpack.c.b16 %v671, %v671
    %673 = vrot.lane.b32.xlu0 %v672, 64
    %v674 = vpop.permute.xlu0 %673
    %vm676 = vcmask 650752
    %677 = vst.msk [vmem:[#allocation2] sm:$0xf] %vm676, %v674
    %v678 = vpack.c.bf16 %v596, %v596
    %v680 = vunpack.c.l.b16 %v678
    %v681 = vpack.c.b16 %v680, %v680
    %682 = vrot.lane.b32.xlu0 %v681, 80
    %v683 = vpop.permute.xlu0 %682
    %vm685 = vcmask 781952
    %686 = vst.msk [vmem:[#allocation2] sm:$0xf] %vm685, %v683
    %v687 = vpack.c.bf16 %v601, %v601
    %v689 = vunpack.c.l.b16 %v687
    %v690 = vpack.c.b16 %v689, %v689
    %691 = vrot.lane.b32.xlu0 %v690, 96
    %v692 = vpop.permute.xlu0 %691
    %vm694 = vcmask 913152
    %695 = vst.msk [vmem:[#allocation2] sm:$0xf] %vm694, %v692
    %v696 = vpack.c.bf16 %v604, %v604
    %v698 = vunpack.c.l.b16 %v696
    %v699 = vpack.c.b16 %v698, %v698
    %700 = vrot.lane.b32.xlu0 %v699, 112
    %v701 = vpop.permute.xlu0 %700
    %vm703 = vcmask 1044352
    %704 = vst.msk [vmem:[#allocation2] sm:$0xf] %vm703, %v701
    %v705 = vpack.c.bf16 %v609, %v609
    %706 = vst.msk [vmem:[#allocation2 + $0x4] sm:$0xf] %vm640, %v705
    %v707 = vpack.c.bf16 %v612, %v612
    %v709 = vunpack.c.l.b16 %v707
    %v710 = vpack.c.b16 %v709, %v709
    %711 = vrot.lane.b32.xlu0 %v710, 16
    %v712 = vpop.permute.xlu0 %711
    %714 = vst.msk [vmem:[#allocation2 + $0x4] sm:$0xf] %vm649, %v712
    %v715 = vpack.c.bf16 %v617, %v617
    %v717 = vunpack.c.l.b16 %v715
    %v718 = vpack.c.b16 %v717, %v717
    %719 = vrot.lane.b32.xlu0 %v718, 32
    %v720 = vpop.permute.xlu0 %719
    %722 = vst.msk [vmem:[#allocation2 + $0x4] sm:$0xf] %vm658, %v720
    %v723 = vpack.c.bf16 %v620, %v620
    %v725 = vunpack.c.l.b16 %v723
    %v726 = vpack.c.b16 %v725, %v725
    %727 = vrot.lane.b32.xlu0 %v726, 48
    %v728 = vpop.permute.xlu0 %727
    %730 = vst.msk [vmem:[#allocation2 + $0x4] sm:$0xf] %vm667, %v728
    %v731 = vpack.c.bf16 %v625, %v625
    %v733 = vunpack.c.l.b16 %v731
    %v734 = vpack.c.b16 %v733, %v733
    %735 = vrot.lane.b32.xlu0 %v734, 64
    %v736 = vpop.permute.xlu0 %735
    %738 = vst.msk [vmem:[#allocation2 + $0x4] sm:$0xf] %vm676, %v736
    %v739 = vpack.c.bf16 %v628, %v628
    %v741 = vunpack.c.l.b16 %v739
    %v742 = vpack.c.b16 %v741, %v741
    %743 = vrot.lane.b32.xlu0 %v742, 80
    %v744 = vpop.permute.xlu0 %743
    %746 = vst.msk [vmem:[#allocation2 + $0x4] sm:$0xf] %vm685, %v744
    %v747 = vpack.c.bf16 %v633, %v633
    %v749 = vunpack.c.l.b16 %v747
    %v750 = vpack.c.b16 %v749, %v749
    %751 = vrot.lane.b32.xlu0 %v750, 96
    %v752 = vpop.permute.xlu0 %751
    %754 = vst.msk [vmem:[#allocation2 + $0x4] sm:$0xf] %vm694, %v752
    %v755 = vpack.c.bf16 %v636, %v636
    %v757 = vunpack.c.l.b16 %v755
    %v758 = vpack.c.b16 %v757, %v757
    %759 = vrot.lane.b32.xlu0 %v758, 112
    %v760 = vpop.permute.xlu0 %759
    %762 = vst.msk [vmem:[#allocation2 + $0x4] sm:$0xf] %vm703, %v760
    %v763 = vld [vmem:[#allocation2] sm:$0xff]
    %v764 = vld [vmem:[%s2 + $0xc0] sm:$0xf]
    %v765 = vld [vmem:[%s2 + $0xc4] sm:$0xf]
    %v766 = vld [vmem:[%s2 + $0xc8] sm:$0xf]
    %v767 = vld [vmem:[%s2 + $0xcc] sm:$0xf]
    %v768 = vld [vmem:[%s2 + $0xd0] sm:$0xf]
    %v769 = vld [vmem:[%s2 + $0xd4] sm:$0xf]
    %v770 = vld [vmem:[%s2 + $0xd8] sm:$0xf]
    %v771 = vld [vmem:[%s2 + $0xdc] sm:$0xf]
    %v772 = vld [vmem:[%s2 + $0xe0] sm:$0xf]
    %v773 = vld [vmem:[%s2 + $0xe4] sm:$0xf]
    %v774 = vld [vmem:[%s2 + $0xe8] sm:$0xf]
    %v775 = vld [vmem:[%s2 + $0xec] sm:$0xf]
    %v776 = vld [vmem:[%s2 + $0xf0] sm:$0xf]
    %v777 = vld [vmem:[%s2 + $0xf4] sm:$0xf]
    %v778 = vld [vmem:[%s2 + $0xf8] sm:$0xf]
    %v779 = vld [vmem:[%s2 + $0xfc] sm:$0xf]
    %v780 = vld [vmem:[%s2 + $0x100] sm:$0xf]
    %v781 = vld [vmem:[%s2 + $0x104] sm:$0xf]
    %v782 = vld [vmem:[%s2 + $0x108] sm:$0xf]
    %v783 = vld [vmem:[%s2 + $0x10c] sm:$0xf]
    %v784 = vld [vmem:[%s2 + $0x110] sm:$0xf]
    %v785 = vld [vmem:[%s2 + $0x114] sm:$0xf]
    %v786 = vld [vmem:[%s2 + $0x118] sm:$0xf]
    %v787 = vld [vmem:[%s2 + $0x11c] sm:$0xf]
    %v788 = vld [vmem:[%s2 + $0x120] sm:$0xf]
    %v789 = vld [vmem:[%s2 + $0x124] sm:$0xf]
    %v790 = vld [vmem:[%s2 + $0x128] sm:$0xf]
    %v791 = vld [vmem:[%s2 + $0x12c] sm:$0xf]
    %v792 = vld [vmem:[%s2 + $0x130] sm:$0xf]
    %v793 = vld [vmem:[%s2 + $0x134] sm:$0xf]
    %v794 = vld [vmem:[%s2 + $0x138] sm:$0xf]
    %v795 = vld [vmem:[%s2 + $0x13c] sm:$0xf]
    %v797 = vunpack.c.l.b16 %v763
    %v798 = vunpack.c.h.b16 %v763
    %v799 = vpack.c.b16 %v797, %v797
    %v800 = vpack.c.b16 %v798, %v798
    %v835 = vunpack.c.l.b16 %v764
    %v836 = vunpack.c.l.b16 %v765
    %v837 = vunpack.c.l.b16 %v766
    %v838 = vunpack.c.l.b16 %v767
    %v839 = vunpack.c.l.b16 %v768
    %v840 = vunpack.c.l.b16 %v769
    %v841 = vunpack.c.l.b16 %v770
    %v842 = vunpack.c.l.b16 %v771
    %v843 = vunpack.c.l.b16 %v772
    %v844 = vunpack.c.l.b16 %v773
    %v845 = vunpack.c.l.b16 %v774
    %v846 = vunpack.c.l.b16 %v775
    %v847 = vunpack.c.l.b16 %v776
    %v848 = vunpack.c.l.b16 %v777
    %v849 = vunpack.c.l.b16 %v778
    %v850 = vunpack.c.l.b16 %v779
    %v851 = vunpack.c.l.b16 %v780
    %v852 = vunpack.c.l.b16 %v781
    %v853 = vunpack.c.l.b16 %v782
    %v854 = vunpack.c.l.b16 %v783
    %v855 = vunpack.c.l.b16 %v784
    %v856 = vunpack.c.l.b16 %v785
    %v857 = vunpack.c.l.b16 %v786
    %v858 = vunpack.c.l.b16 %v787
    %v859 = vunpack.c.l.b16 %v788
    %v860 = vunpack.c.l.b16 %v789
    %v861 = vunpack.c.l.b16 %v790
    %v862 = vunpack.c.l.b16 %v791
    %v863 = vunpack.c.l.b16 %v792
    %v864 = vunpack.c.l.b16 %v793
    %v865 = vunpack.c.l.b16 %v794
    %v866 = vunpack.c.l.b16 %v795
    %v867 = vpack.c.b16 %v836, %v835
    %v868 = vpack.c.b16 %v838, %v837
    %v869 = vpack.c.b16 %v840, %v839
    %v870 = vpack.c.b16 %v842, %v841
    %v871 = vpack.c.b16 %v844, %v843
    %v872 = vpack.c.b16 %v846, %v845
    %v873 = vpack.c.b16 %v848, %v847
    %v874 = vpack.c.b16 %v850, %v849
    %v875 = vpack.c.b16 %v852, %v851
    %v876 = vpack.c.b16 %v854, %v853
    %v877 = vpack.c.b16 %v856, %v855
    %v878 = vpack.c.b16 %v858, %v857
    %v879 = vpack.c.b16 %v860, %v859
    %v880 = vpack.c.b16 %v862, %v861
    %v881 = vpack.c.b16 %v864, %v863
    %v882 = vpack.c.b16 %v866, %v865
    %899 = vmatprep.subr.bf16.mxu0 0
    %900 = vmatpush1.bf16.msra.mxu0 %v874
    %901 = vmatprep.subr.bf16.mxu0 0
    %902 = vmatpush1.bf16.msra.mxu0 %v873
    %903 = vmatprep.subr.bf16.mxu0 0
    %904 = vmatpush1.bf16.msra.mxu0 %v872
    %905 = vmatprep.subr.bf16.mxu0 0
    %906 = vmatpush1.bf16.msra.mxu0 %v871
    %907 = vmatprep.subr.bf16.mxu0 0
    %908 = vmatpush1.bf16.msra.mxu0 %v870
    %909 = vmatprep.subr.bf16.mxu0 0
    %910 = vmatpush1.bf16.msra.mxu0 %v869
    %911 = vmatprep.subr.bf16.mxu0 0
    %912 = vmatpush1.bf16.msra.mxu0 %v868
    %913 = vmatprep.subr.bf16.mxu0 0
    %914 = vmatpush1.bf16.msra.mxu0 %v867
    %915 = vmatprep.subr.bf16.mxu0 0
    %916 = vmatpush2.bf16.msra.mxu0 %v882
    %917 = vmatprep.subr.bf16.mxu0 0
    %918 = vmatpush2.bf16.msra.mxu0 %v881
    %919 = vmatprep.subr.bf16.mxu0 0
    %920 = vmatpush2.bf16.msra.mxu0 %v880
    %921 = vmatprep.subr.bf16.mxu0 0
    %922 = vmatpush2.bf16.msra.mxu0 %v879
    %923 = vmatprep.subr.bf16.mxu0 0
    %924 = vmatpush2.bf16.msra.mxu0 %v878
    %925 = vmatprep.subr.bf16.mxu0 0
    %926 = vmatpush2.bf16.msra.mxu0 %v877
    %927 = vmatprep.subr.bf16.mxu0 0
    %928 = vmatpush2.bf16.msra.mxu0 %v876
    %929 = vmatprep.subr.bf16.mxu0 0
    %930 = vmatpush2.bf16.msra.mxu0 %v875
    %931 = vmatprep.mubr.bf16.mxu0 %v800
    %932 = vmatmul.mubr.bf16.gmra.mxu0 %v799
    %v933 = vpop.f32.mrf.mxu0
    %v934 = vadd.f32 0.0, %v933
    %v935 = vpop.f32.mrf.mxu0
    %v936 = vpop.f32.mrf.mxu0
    %v937 = vpop.f32.mrf.mxu0
    %938 = vdwg.mxu0
    %vm939 = vcmask 261120
    %v940 = vsel %vm939, %v934, 0.0
    %v941 = vrot.slane %v940, 4
    %v942 = vadd.f32 %v940, %v941
    %v943 = vrot.slane %v942, 2
    %v944 = vadd.f32 %v942, %v943
    %v945 = vrot.slane %v944, 1
    %v946 = vadd.f32 %v944, %v945
    %v947 = vmul.f32 %v934, %v934
    %v948 = vsel %vm939, %v947, 0.0
    %v949 = vrot.slane %v948, 4
    %v950 = vadd.f32 %v948, %v949
    %v951 = vrot.slane %v950, 2
    %v952 = vadd.f32 %v950, %v951
    %v953 = vrot.slane %v952, 1
    %v954 = vadd.f32 %v952, %v953
    %v955 = vmul.f32 %v946, 0.125
    %v956 = vmul.f32 %v954, 0.125
    %v957 = vmul.f32 %v955, %v955
    %v958 = vsub.f32 %v956, %v957
    %v959 = vld [vmem:[%s3 + $0x2] sm:$0x1]
    %v960 = vadd.f32 %v958, 1e-05
    %v961 = vrsqrt.pop %v960
    %v962 = vmul.f32 %v959, %v961
    %v963 = vld [vmem:[%s3 + $0x3] sm:$0x1]
    %v964 = vmul.f32 %v955, %v962
    %v965 = vsub.f32 %v963, %v964
    %v966 = vlaneseq
    %v967 = vshrl.u32 %v966, 7
    %v968 = vsub.s32 0, %v967
    %v969 = vrot.slane %v962, %v968
    %v970 = vmul.f32 %v934, %v969
    %v971 = vlaneseq
    %v972 = vshrl.u32 %v971, 7
    %v973 = vsub.s32 0, %v972
    %v974 = vrot.slane %v965, %v973
    %v975 = vadd.f32 %v970, %v974
    %v976 = vmax.f32 %v975, 0.0
    %v977 = vpack.c.bf16 %v976, %v976
    %vm978 = vcmask 253952
    %979 = vst.msk [vmem:[#allocation3] sm:$0x1] %vm978, %v977
    %v982 = vunpack.c.l.s4 1966171168
    %v983 = vunpack.c.0.s8 %v982
    %v984 = vlaneseq
    %v985 = vshrl.u32 %v984, 7
    %v986 = vsub.s32 %v983, %v985
    %v987 = vrot.slane %v977, %v986
    %v988 = vcombine.high %v987, %v987
    %v990 = vunpack.c.l.s4 1966171168
    %v991 = vunpack.c.0.s8 %v990
    %v992 = vlaneseq
    %v993 = vshrl.u32 %v992, 7
    %v994 = vsub.s32 %v991, %v993
    %v995 = vrot.slane %v987, %v994
    %v997 = vunpack.c.l.s4 1966171168
    %v998 = vunpack.c.0.s8 %v997
    %v999 = vlaneseq
    %v1000 = vshrl.u32 %v999, 7
    %v1001 = vsub.s32 %v998, %v1000
    %v1002 = vrot.slane %v988, %v1001
    %1003 = vrot.lane.b32.xlu0 %v1002, 32
    %v1004 = vpop.permute.xlu0 %1003
    %vm1006 = vcmask 516352
    %1007 = vst.msk [vmem:[#allocation3] sm:$0x1] %vm1006, %v1004
    %v1008 = vcombine.high %v995, %v995
    %1009 = vrot.lane.b32.xlu0 %v1008, 64
    %v1010 = vpop.permute.xlu0 %1009
    %vm1012 = vcmask 778752
    %1013 = vst.msk [vmem:[#allocation3] sm:$0x1] %vm1012, %v1010
    %v1014 = vcombine.high %v1002, %v1002
    %1015 = vrot.lane.b32.xlu0 %v1014, 96
    %v1016 = vpop.permute.xlu0 %1015
    %vm1018 = vcmask 1041152
    %1019 = vst.msk [vmem:[#allocation3] sm:$0x1] %vm1018, %v1016
    %v1020 = vld [vmem:[%s1] sm:$0x3]
    %v1021 = vpack.c.bf16 %v1020, %v1020
    %vm1022 = vcmask 8192
    %1023 = vst.msk [vmem:[#allocation3 + $0x1] sm:$0x1] %vm1022, %v1021
    %v1024 = vld [vmem:[#allocation3] sm:$0x3]
    %v1025 = vld [vmem:[%s2 + $0x140] sm:$0xf]
    %v1026 = vld [vmem:[%s2 + $0x144] sm:$0xf]
    %v1027 = vld [vmem:[%s2 + $0x148] sm:$0xf]
    %v1028 = vld [vmem:[%s2 + $0x14c] sm:$0xf]
    %v1029 = vld [vmem:[%s2 + $0x150] sm:$0xf]
    %v1030 = vld [vmem:[%s2 + $0x154] sm:$0xf]
    %v1031 = vld [vmem:[%s2 + $0x158] sm:$0xf]
    %v1032 = vld [vmem:[%s2 + $0x15c] sm:$0xf]
    %v1033 = vld [vmem:[%s2 + $0x160] sm:$0xf]
    %v1034 = vld [vmem:[%s2 + $0x164] sm:$0xf]
    %v1035 = vld [vmem:[%s2 + $0x168] sm:$0xf]
    %v1036 = vld [vmem:[%s2 + $0x16c] sm:$0xf]
    %v1037 = vld [vmem:[%s2 + $0x170] sm:$0xf]
    %v1038 = vld [vmem:[%s2 + $0x174] sm:$0xf]
    %v1039 = vld [vmem:[%s2 + $0x178] sm:$0xf]
    %v1040 = vld [vmem:[%s2 + $0x17c] sm:$0xf]
    %v1041 = vld [vmem:[%s2 + $0x180] sm:$0x1]
    %v1042 = vld [vmem:[%s3 + $0x4] sm:$0x1]
    %v1043 = vlaneseq
    %v1044 = vshrl.u32 %v1043, 7
    %v1045 = vsub.s32 0, %v1044
    %v1046 = vrot.slane %v1042, %v1045
    %v1049 = vunpack.c.l.s4 1966171168
    %v1050 = vunpack.c.0.s8 %v1049
    %v1051 = vlaneseq
    %v1052 = vshrl.u32 %v1051, 7
    %v1053 = vsub.s32 %v1050, %v1052
    %v1054 = vrot.slane %v1024, %v1053
    %v1055 = vcombine.high %v1054, %v1054
    %v1057 = vunpack.c.l.s4 1966171168
    %v1058 = vunpack.c.0.s8 %v1057
    %v1059 = vlaneseq
    %v1060 = vshrl.u32 %v1059, 7
    %v1061 = vsub.s32 %v1058, %v1060
    %v1062 = vrot.slane %v1054, %v1061
    %v1064 = vunpack.c.l.s4 1966171168
    %v1065 = vunpack.c.0.s8 %v1064
    %v1066 = vlaneseq
    %v1067 = vshrl.u32 %v1066, 7
    %v1068 = vsub.s32 %v1065, %v1067
    %v1069 = vrot.slane %v1055, %v1068
    %v1088 = vunpack.c.l.b16 %v1025
    %v1089 = vunpack.c.l.b16 %v1026
    %v1090 = vunpack.c.l.b16 %v1027
    %v1091 = vunpack.c.l.b16 %v1028
    %v1092 = vunpack.c.l.b16 %v1029
    %v1093 = vunpack.c.l.b16 %v1030
    %v1094 = vunpack.c.l.b16 %v1031
    %v1095 = vunpack.c.l.b16 %v1032
    %v1096 = vunpack.c.l.b16 %v1033
    %v1097 = vunpack.c.l.b16 %v1034
    %v1098 = vunpack.c.l.b16 %v1035
    %v1099 = vunpack.c.l.b16 %v1036
    %v1100 = vunpack.c.l.b16 %v1037
    %v1101 = vunpack.c.l.b16 %v1038
    %v1102 = vunpack.c.l.b16 %v1039
    %v1103 = vunpack.c.l.b16 %v1040
    %v1104 = vunpack.c.l.b16 %v1041
    %v1105 = vpack.c.b16 %v1089, %v1088
    %v1106 = vpack.c.b16 %v1091, %v1090
    %v1107 = vpack.c.b16 %v1093, %v1092
    %v1108 = vpack.c.b16 %v1095, %v1094
    %v1109 = vpack.c.b16 %v1097, %v1096
    %v1110 = vpack.c.b16 %v1099, %v1098
    %v1111 = vpack.c.b16 %v1101, %v1100
    %v1112 = vpack.c.b16 %v1103, %v1102
    %v1113 = vpack.c.b16 %v1104, %v1104
    %vm1122 = vcmask 15360
    %v1124 = vsel %vm1122, %v1069, 0
    %v1127 = vsel %vm538, %v1113, 0
    %1129 = vmatprep.subr.bf16.mxu0 0
    %1130 = vmatpush1.bf16.msra.mxu0 %v1112
    %1131 = vmatprep.subr.bf16.mxu0 0
    %1132 = vmatpush1.bf16.msra.mxu0 %v1111
    %1133 = vmatprep.subr.bf16.mxu0 0
    %1134 = vmatpush1.bf16.msra.mxu0 %v1110
    %1135 = vmatprep.subr.bf16.mxu0 0
    %1136 = vmatpush1.bf16.msra.mxu0 %v1109
    %1137 = vmatprep.subr.bf16.mxu0 0
    %1138 = vmatpush1.bf16.msra.mxu0 %v1108
    %1139 = vmatprep.subr.bf16.mxu0 0
    %1140 = vmatpush1.bf16.msra.mxu0 %v1107
    %1141 = vmatprep.subr.bf16.mxu0 0
    %1142 = vmatpush1.bf16.msra.mxu0 %v1106
    %1143 = vmatprep.subr.bf16.mxu0 0
    %1144 = vmatpush1.bf16.msra.mxu0 %v1105
    %1145 = vmatprep.subr.bf16.mxu0 0
    %1146 = vmatpush2.bf16.msra.mxu0 0
    %1147 = vmatprep.subr.bf16.mxu0 0
    %1148 = vmatpush2.bf16.msra.mxu0 0
    %1149 = vmatprep.subr.bf16.mxu0 0
    %1150 = vmatpush2.bf16.msra.mxu0 0
    %1151 = vmatprep.subr.bf16.mxu0 0
    %1152 = vmatpush2.bf16.msra.mxu0 0
    %1153 = vmatprep.subr.bf16.mxu0 0
    %1154 = vmatpush2.bf16.msra.mxu0 0
    %1155 = vmatprep.subr.bf16.mxu0 0
    %1156 = vmatpush2.bf16.msra.mxu0 0
    %1157 = vmatprep.subr.bf16.mxu0 0
    %1158 = vmatpush2.bf16.msra.mxu0 0
    %1159 = vmatprep.subr.bf16.mxu0 0
    %1160 = vmatpush2.bf16.msra.mxu0 %v1127
    %1161 = vmatprep.mubr.bf16.mxu0 %v1124
    %1162 = vmatmul.mubr.bf16.gmra.mxu0 %v1062
    %v1163 = vpop.f32.mrf.mxu0
    %v1164 = vadd.f32 %v1046, %v1163
    %v1165 = vpop.f32.mrf.mxu0
    %v1166 = vpop.f32.mrf.mxu0
    %v1167 = vpop.f32.mrf.mxu0
    %1168 = vdwg.mxu0
    %vm1169 = vcmask 41984
    %1170 = vst.msk [vmem:[#allocation4] sm:$0x3] %vm1169, %v1164
    // Predicated region
    $region18: #{dqn_forward.1} parent=1 // pred_check
      _
    $region19: #{dqn_forward.1} parent=1 // pred_check_branch
      %1172 = sbr.rel (0) target = $region21
    $region20: #{dqn_forward.1} parent=1 // pred_region
      %s1174 = ssub.s32 32, 32
      %1175 = vsyncadd [#allocation5], %s1174
      %s1177 = sshll.u32 [#allocation4], 4
      %s1178 = int_to_ptr.vmem [resolvable:$true] %s1177
      %1180 = dma.vmem_to_hbm [thread:$0]  %s1178, 32, %s4, [#allocation5]
    $region21: #{dqn_forward.1} parent=1 // pred_fallthru
      _
    // Predicated region
    $region22: #{dqn_forward.1} parent=1 // pred_check
      _
    $region23: #{dqn_forward.1} parent=1 // pred_check_branch
      %1182 = sbr.rel (0) target = $region25
    $region24: #{dqn_forward.1} parent=1 // pred_region
      %1183 = dma.done [#allocation5], 32
    $region25: #{dqn_forward.1} parent=1 // pred_fallthru
      _
    %1184 = vsyncpa [#allocation5], 1

</llo_original>
